<compile_context>
chip_gen: v7x
topology: tpu7x:2x2x1
jax: 0.10.0
libtpu: 0.0.40
codegen_flags: <defaults>
</compile_context>

<pallas_src>
import jax
import jax.numpy as jnp
from jax.experimental import pallas as pl
from jax.experimental.pallas import tpu as pltpu

HIDDEN = (512, 256, 128, 128)
BN_EPS = 1e-5
LANE = 128
SUBLANE_BF16 = 16          # bf16 packs 16 rows per vreg sublane group
NEG_INF = -1e30


def _round_up(n, m):
    return (n + m - 1) // m * m


def mlp_kernel(x_ref,
               w1_ref, b1_ref,
               w2_ref, b2_ref,
               w3_ref, b3_ref,
               w4_ref, b4_ref,
               w5_ref, b5_ref,
               out_ref):
    def lin_relu(h_bf16, w_ref, b_ref):
        # bf16 MXU matmul, f32 accumulate; bias already carries the folded BN affine.
        y = jnp.dot(h_bf16, w_ref[...], preferred_element_type=jnp.float32) + b_ref[...]
        # ReLU in f32, cast back to bf16 only for the next matmul's operands.
        return jnp.maximum(y, 0.0).astype(jnp.bfloat16)

    h = x_ref[...]                       # (TB, 128) bf16
    h = lin_relu(h, w1_ref, b1_ref)
    h = lin_relu(h, w2_ref, b2_ref)
    h = lin_relu(h, w3_ref, b3_ref)
    h = lin_relu(h, w4_ref, b4_ref)

    # fc5 + softmax over features.  Padded output columns have bias = -1e30 (f32) so
    # exp() underflows to exactly 0 and they never affect the max / denominator.
    logits = jnp.dot(h, w5_ref[...], preferred_element_type=jnp.float32) + b5_ref[...]
    m = jnp.max(logits, axis=1, keepdims=True)
    e = jnp.exp(logits - m)
    inv = pl.reciprocal(jnp.sum(e, axis=1, keepdims=True), approx=False)  # exact
    out_ref[...] = (e * inv).astype(out_ref.dtype)                        # bf16 store


def init_params(key, input_dim, output_dim):
    """Deterministic params mirroring the PyTorch module's shapes exactly
    (nn.Linear weight [out, in], bias [out]; BatchNorm1d gamma/beta/mean/var [out])."""
    dims = (input_dim,) + HIDDEN + (output_dim,)
    params = {}
    for li in range(5):
        fan_in, fan_out = dims[li], dims[li + 1]
        key, kw, kb, kg, kbeta = jax.random.split(key, 5)
        bound = 1.0 / jnp.sqrt(float(fan_in))
        params[f"fc{li+1}_w"] = jax.random.uniform(kw, (fan_out, fan_in), jnp.float32, -bound, bound)
        params[f"fc{li+1}_b"] = jax.random.uniform(kb, (fan_out,), jnp.float32, -bound, bound)
        if li < 4:
            params[f"bn{li+1}_gamma"] = 1.0 + 0.1 * jax.random.normal(kg, (fan_out,), jnp.float32)
            params[f"bn{li+1}_beta"] = 0.1 * jax.random.normal(kbeta, (fan_out,), jnp.float32)
            params[f"bn{li+1}_mean"] = jnp.zeros((fan_out,), jnp.float32)
            params[f"bn{li+1}_var"] = jnp.ones((fan_out,), jnp.float32)
    return params


def fold_and_pad_params(params, input_dim, output_dim):
    """Host-side precompute: fold eval-mode BN into the preceding Linear
    (W' = W.T * scale, b' = b * scale + shift), pad input/output feature dims to
    the 128-lane width, and cast weights to bf16 (biases stay f32).
    Returns flat kernel args [w1, b1, ..., w5, b5]."""
    # TODO(synk): train-mode BatchNorm (batch statistics + running-stat updates) is not reproduced.
    dims = (input_dim,) + HIDDEN + (output_dim,)
    in_pad = _round_up(input_dim, LANE)
    out_pad = _round_up(output_dim, LANE)
    args = []
    for li in range(5):
        fan_in, fan_out = dims[li], dims[li + 1]
        w = params[f"fc{li+1}_w"].T            # -> [in, out]
        b = params[f"fc{li+1}_b"]
        if li < 4:
            scale = params[f"bn{li+1}_gamma"] / jnp.sqrt(params[f"bn{li+1}_var"] + BN_EPS)
            shift = params[f"bn{li+1}_beta"] - params[f"bn{li+1}_mean"] * scale
            w = w * scale[None, :]
            b = b * scale + shift
        wi = in_pad if li == 0 else fan_in      # hidden dims are already 128-multiples
        wo = out_pad if li == 4 else fan_out
        w_p = jnp.zeros((wi, wo), jnp.float32).at[:fan_in, :fan_out].set(w)
        if li == 4:
            b_p = jnp.full((1, wo), NEG_INF, jnp.float32).at[0, :fan_out].set(b)
        else:
            b_p = b.reshape(1, fan_out)
        args.append(w_p.astype(jnp.bfloat16))   # bf16 weights for the MXU
        args.append(b_p.astype(jnp.float32))    # f32 bias (BN fold / -1e30 mask) - keep f32!
    return args


def mlp_forward(x, kernel_args, output_dim, *, block_b=1024):
    B, din = x.shape
    in_pad = kernel_args[0].shape[0]
    out_pad = kernel_args[-2].shape[1]

    # Batch tile: multiple of 16 (bf16 sublane packing), ~ceil(B/2) so mid/large
    # batches produce >=2 "parallel" grid steps (both v7x TensorCores busy),
    # capped at block_b to bound VMEM (no vmem_limit override needed at <=1024).
    half = -(-B // 2)
    tb = max(SUBLANE_BF16, min(block_b, _round_up(half, SUBLANE_BF16)))
    bp = _round_up(B, tb)                 # < tb extra rows; negligible compute
    grid = (bp // tb,)

    # Single fused cast + pad (one HBM pass): pad feature dim to the 128-lane width
    # and batch to the next tile multiple.
    x_pad = jnp.pad(x.astype(jnp.bfloat16), ((0, bp - B), (0, in_pad - din)))

    in_specs = [pl.BlockSpec((tb, in_pad), lambda i: (i, 0))]
    for a in kernel_args:
        # Weights/biases stay VMEM-resident across the batch grid (same block every step).
        in_specs.append(pl.BlockSpec(a.shape, lambda i: (0, 0)))

    # Advisory cost estimate so XLA schedules surrounding pad/cast/slice around the kernel.
    dims = (in_pad,) + HIDDEN + (out_pad,)
    flops = 2 * bp * sum(dims[i] * dims[i + 1] for i in range(5))
    bytes_accessed = (int(x_pad.size) * 2
                      + bp * out_pad * 2
                      + sum(int(a.size) * a.dtype.itemsize for a in kernel_args))
    cost = pl.CostEstimate(flops=int(flops),
                           transcendentals=int(bp * (out_pad + 1)),
                           bytes_accessed=int(bytes_accessed))

    out = pl.pallas_call(
        mlp_kernel,
        out_shape=jax.ShapeDtypeStruct((bp, out_pad), jnp.bfloat16),   # bf16 writeback
        grid=grid,
        in_specs=in_specs,
        out_specs=pl.BlockSpec((tb, out_pad), lambda i: (i, 0)),
        compiler_params=pltpu.CompilerParams(
            dimension_semantics=("parallel",)),
        cost_estimate=cost,
    )(x_pad, *kernel_args)
    return out[:B, :output_dim]


def ref_forward(x, params):
    """Pure-JAX f32 reference matching the PyTorch module in eval mode."""
    h = x
    for li in range(5):
        h = h @ params[f"fc{li+1}_w"].T + params[f"fc{li+1}_b"]
        if li < 4:
            scale = params[f"bn{li+1}_gamma"] / jnp.sqrt(params[f"bn{li+1}_var"] + BN_EPS)
            shift = params[f"bn{li+1}_beta"] - params[f"bn{li+1}_mean"] * scale
            h = jnp.maximum(h * scale + shift, 0.0)
    return jax.nn.softmax(h, axis=1)


if __name__ == "__main__":
    key = jax.random.PRNGKey(0)
    batch, input_dim, output_dim = 32, 64, 16   # batch=32 -> tb=16, grid=(2,)

    kx, kp = jax.random.split(key)
    x = jax.random.normal(kx, (batch, input_dim), jnp.float32)
    params = init_params(kp, input_dim, output_dim)
    kernel_args = fold_and_pad_params(params, input_dim, output_dim)

    probs = jax.block_until_ready(mlp_forward(x, kernel_args, output_dim))

    assert probs.shape == (batch, output_dim)
    probs_f32 = probs.astype(jnp.float32)
    # softmax rows sum to ~1 (bf16 output rounding -> slightly relaxed tolerance)
    assert jnp.allclose(jnp.sum(probs_f32, axis=1), 1.0, atol=1e-2)
    # match the f32 reference within bf16-matmul + bf16-output tolerance
    ref = ref_forward(x, params)
    assert jnp.allclose(probs_f32, ref, atol=3e-2), float(jnp.max(jnp.abs(probs_f32 - ref)))
    print("KERNEL_OK")
</pallas_src>

<mosaic_0001>
module attributes {stable_mosaic.version = 11 : i64} {
  func.func @mlp_kernel(%arg0: i32, %arg1: memref<16x128xbf16, #tpu.memory_space<vmem>>, %arg2: memref<128x512xbf16, #tpu.memory_space<vmem>>, %arg3: memref<1x512xf32, #tpu.memory_space<vmem>>, %arg4: memref<512x256xbf16, #tpu.memory_space<vmem>>, %arg5: memref<1x256xf32, #tpu.memory_space<vmem>>, %arg6: memref<256x128xbf16, #tpu.memory_space<vmem>>, %arg7: memref<1x128xf32, #tpu.memory_space<vmem>>, %arg8: memref<128x128xbf16, #tpu.memory_space<vmem>>, %arg9: memref<1x128xf32, #tpu.memory_space<vmem>>, %arg10: memref<128x128xbf16, #tpu.memory_space<vmem>>, %arg11: memref<1x128xf32, #tpu.memory_space<vmem>>, %arg12: memref<16x128xbf16, #tpu.memory_space<vmem>>) attributes {dimension_semantics = [#tpu.dimension_semantics<parallel>], iteration_bounds = array<i64: 2>, scalar_prefetch = 0 : i64, scratch_operands = 0 : i64, tpu.core_type = #tpu.core_type<tc>, window_params = [{transform_indices = @transform_0, window_bounds = array<i64: 16, 128>}, {pipeline_mode = #tpu.pipeline_mode<synchronous>, transform_indices = @transform_1, window_bounds = array<i64: 128, 512>}, {pipeline_mode = #tpu.pipeline_mode<synchronous>, transform_indices = @transform_2, window_bounds = array<i64: 1, 512>}, {pipeline_mode = #tpu.pipeline_mode<synchronous>, transform_indices = @transform_3, window_bounds = array<i64: 512, 256>}, {pipeline_mode = #tpu.pipeline_mode<synchronous>, transform_indices = @transform_4, window_bounds = array<i64: 1, 256>}, {pipeline_mode = #tpu.pipeline_mode<synchronous>, transform_indices = @transform_5, window_bounds = array<i64: 256, 128>}, {pipeline_mode = #tpu.pipeline_mode<synchronous>, transform_indices = @transform_6, window_bounds = array<i64: 1, 128>}, {pipeline_mode = #tpu.pipeline_mode<synchronous>, transform_indices = @transform_7, window_bounds = array<i64: 128, 128>}, {pipeline_mode = #tpu.pipeline_mode<synchronous>, transform_indices = @transform_8, window_bounds = array<i64: 1, 128>}, {pipeline_mode = #tpu.pipeline_mode<synchronous>, transform_indices = @transform_9, window_bounds = array<i64: 128, 128>}, {pipeline_mode = #tpu.pipeline_mode<synchronous>, transform_indices = @transform_10, window_bounds = array<i64: 1, 128>}, {transform_indices = @transform_11, window_bounds = array<i64: 16, 128>}]} {
    %c0 = arith.constant 0 : index
    %c0_0 = arith.constant 0 : index
    %0 = vector.load %arg1[%c0, %c0_0] : memref<16x128xbf16, #tpu.memory_space<vmem>>, vector<16x128xbf16>
    %c0_1 = arith.constant 0 : index
    %c0_2 = arith.constant 0 : index
    %1 = vector.load %arg2[%c0_1, %c0_2] : memref<128x512xbf16, #tpu.memory_space<vmem>>, vector<128x512xbf16>
    %cst = arith.constant dense<0.000000e+00> : vector<16x512xf32>
    %2 = tpu.matmul %0, %1, %cst {dimension_numbers = #tpu.dot_dimension_numbers<[1], [0], [0], [1], [0, 0, 1, 1], [], []>} : vector<16x128xbf16>, vector<128x512xbf16>, vector<16x512xf32> -> vector<16x512xf32>
    %c0_3 = arith.constant 0 : index
    %c0_4 = arith.constant 0 : index
    %3 = vector.load %arg3[%c0_3, %c0_4] : memref<1x512xf32, #tpu.memory_space<vmem>>, vector<1x512xf32>
    %4 = vector.broadcast %3 : vector<1x512xf32> to vector<16x512xf32>
    %5 = arith.addf %2, %4 : vector<16x512xf32>
    %cst_5 = arith.constant 0.000000e+00 : f32
    %6 = vector.broadcast %cst_5 : f32 to vector<16x512xf32>
    %7 = arith.maximumf %5, %6 : vector<16x512xf32>
    %8 = arith.truncf %7 : vector<16x512xf32> to vector<16x512xbf16>
    %c0_6 = arith.constant 0 : index
    %c0_7 = arith.constant 0 : index
    %9 = vector.load %arg4[%c0_6, %c0_7] : memref<512x256xbf16, #tpu.memory_space<vmem>>, vector<512x256xbf16>
    %cst_8 = arith.constant dense<0.000000e+00> : vector<16x256xf32>
    %10 = tpu.matmul %8, %9, %cst_8 {dimension_numbers = #tpu.dot_dimension_numbers<[1], [0], [0], [1], [0, 0, 1, 1], [], []>} : vector<16x512xbf16>, vector<512x256xbf16>, vector<16x256xf32> -> vector<16x256xf32>
    %c0_9 = arith.constant 0 : index
    %c0_10 = arith.constant 0 : index
    %11 = vector.load %arg5[%c0_9, %c0_10] : memref<1x256xf32, #tpu.memory_space<vmem>>, vector<1x256xf32>
    %12 = vector.broadcast %11 : vector<1x256xf32> to vector<16x256xf32>
    %13 = arith.addf %10, %12 : vector<16x256xf32>
    %cst_11 = arith.constant 0.000000e+00 : f32
    %14 = vector.broadcast %cst_11 : f32 to vector<16x256xf32>
    %15 = arith.maximumf %13, %14 : vector<16x256xf32>
    %16 = arith.truncf %15 : vector<16x256xf32> to vector<16x256xbf16>
    %c0_12 = arith.constant 0 : index
    %c0_13 = arith.constant 0 : index
    %17 = vector.load %arg6[%c0_12, %c0_13] : memref<256x128xbf16, #tpu.memory_space<vmem>>, vector<256x128xbf16>
    %cst_14 = arith.constant dense<0.000000e+00> : vector<16x128xf32>
    %18 = tpu.matmul %16, %17, %cst_14 {dimension_numbers = #tpu.dot_dimension_numbers<[1], [0], [0], [1], [0, 0, 1, 1], [], []>} : vector<16x256xbf16>, vector<256x128xbf16>, vector<16x128xf32> -> vector<16x128xf32>
    %c0_15 = arith.constant 0 : index
    %c0_16 = arith.constant 0 : index
    %19 = vector.load %arg7[%c0_15, %c0_16] : memref<1x128xf32, #tpu.memory_space<vmem>>, vector<1x128xf32>
    %20 = vector.broadcast %19 : vector<1x128xf32> to vector<16x128xf32>
    %21 = arith.addf %18, %20 : vector<16x128xf32>
    %cst_17 = arith.constant 0.000000e+00 : f32
    %22 = vector.broadcast %cst_17 : f32 to vector<16x128xf32>
    %23 = arith.maximumf %21, %22 : vector<16x128xf32>
    %24 = arith.truncf %23 : vector<16x128xf32> to vector<16x128xbf16>
    %c0_18 = arith.constant 0 : index
    %c0_19 = arith.constant 0 : index
    %25 = vector.load %arg8[%c0_18, %c0_19] : memref<128x128xbf16, #tpu.memory_space<vmem>>, vector<128x128xbf16>
    %cst_20 = arith.constant dense<0.000000e+00> : vector<16x128xf32>
    %26 = tpu.matmul %24, %25, %cst_20 {dimension_numbers = #tpu.dot_dimension_numbers<[1], [0], [0], [1], [0, 0, 1, 1], [], []>} : vector<16x128xbf16>, vector<128x128xbf16>, vector<16x128xf32> -> vector<16x128xf32>
    %c0_21 = arith.constant 0 : index
    %c0_22 = arith.constant 0 : index
    %27 = vector.load %arg9[%c0_21, %c0_22] : memref<1x128xf32, #tpu.memory_space<vmem>>, vector<1x128xf32>
    %28 = vector.broadcast %27 : vector<1x128xf32> to vector<16x128xf32>
    %29 = arith.addf %26, %28 : vector<16x128xf32>
    %cst_23 = arith.constant 0.000000e+00 : f32
    %30 = vector.broadcast %cst_23 : f32 to vector<16x128xf32>
    %31 = arith.maximumf %29, %30 : vector<16x128xf32>
    %32 = arith.truncf %31 : vector<16x128xf32> to vector<16x128xbf16>
    %c0_24 = arith.constant 0 : index
    %c0_25 = arith.constant 0 : index
    %33 = vector.load %arg10[%c0_24, %c0_25] : memref<128x128xbf16, #tpu.memory_space<vmem>>, vector<128x128xbf16>
    %cst_26 = arith.constant dense<0.000000e+00> : vector<16x128xf32>
    %34 = tpu.matmul %32, %33, %cst_26 {dimension_numbers = #tpu.dot_dimension_numbers<[1], [0], [0], [1], [0, 0, 1, 1], [], []>} : vector<16x128xbf16>, vector<128x128xbf16>, vector<16x128xf32> -> vector<16x128xf32>
    %c0_27 = arith.constant 0 : index
    %c0_28 = arith.constant 0 : index
    %35 = vector.load %arg11[%c0_27, %c0_28] : memref<1x128xf32, #tpu.memory_space<vmem>>, vector<1x128xf32>
    %36 = vector.broadcast %35 : vector<1x128xf32> to vector<16x128xf32>
    %37 = arith.addf %34, %36 : vector<16x128xf32>
    %cst_29 = arith.constant dense<0xFF800000> : vector<16xf32>
    %38 = vector.multi_reduction <maximumf>, %37, %cst_29 [1] : vector<16x128xf32> to vector<16xf32>
    %39 = vector.shape_cast %38 : vector<16xf32> to vector<16x1xf32>
    %40 = vector.broadcast %39 : vector<16x1xf32> to vector<16x128xf32>
    %41 = arith.subf %37, %40 : vector<16x128xf32>
    %42 = math.exp %41 : vector<16x128xf32>
    %cst_30 = arith.constant dense<0.000000e+00> : vector<16xf32>
    %43 = vector.multi_reduction <add>, %42, %cst_30 [1] : vector<16x128xf32> to vector<16xf32>
    %44 = vector.shape_cast %43 : vector<16xf32> to vector<16x1xf32>
    %45 = tpu.reciprocal %44 : vector<16x1xf32> -> vector<16x1xf32>
    %46 = vector.broadcast %45 : vector<16x1xf32> to vector<16x128xf32>
    %47 = arith.mulf %42, %46 : vector<16x128xf32>
    %48 = arith.truncf %47 : vector<16x128xf32> to vector<16x128xbf16>
    %c0_31 = arith.constant 0 : index
    %c0_32 = arith.constant 0 : index
    %49 = vector.load %arg12[%c0_31, %c0_32] : memref<16x128xbf16, #tpu.memory_space<vmem>>, vector<16x128xbf16>
    tpu.vector_store %arg12[%c0_31, %c0_32], %48 {strides = array<i32>} : memref<16x128xbf16, #tpu.memory_space<vmem>>, vector<16x128xbf16>,
    return
  }
  func.func @transform_0(%arg0: i32) -> (i32, i32) {
    %c0_i32 = arith.constant 0 : i32
    %c0_i32_0 = arith.constant 0 : i32
    return %arg0, %c0_i32 : i32, i32
  }
  func.func @transform_1(%arg0: i32) -> (i32, i32) {
    %c0_i32 = arith.constant 0 : i32
    %c0_i32_0 = arith.constant 0 : i32
    %c0_i32_1 = arith.constant 0 : i32
    return %c0_i32, %c0_i32_0 : i32, i32
  }
  func.func @transform_2(%arg0: i32) -> (i32, i32) {
    %c0_i32 = arith.constant 0 : i32
    %c0_i32_0 = arith.constant 0 : i32
    %c0_i32_1 = arith.constant 0 : i32
    return %c0_i32, %c0_i32_0 : i32, i32
  }
  func.func @transform_3(%arg0: i32) -> (i32, i32) {
    %c0_i32 = arith.constant 0 : i32
    %c0_i32_0 = arith.constant 0 : i32
    %c0_i32_1 = arith.constant 0 : i32
    return %c0_i32, %c0_i32_0 : i32, i32
  }
  func.func @transform_4(%arg0: i32) -> (i32, i32) {
    %c0_i32 = arith.constant 0 : i32
    %c0_i32_0 = arith.constant 0 : i32
    %c0_i32_1 = arith.constant 0 : i32
    return %c0_i32, %c0_i32_0 : i32, i32
  }
  func.func @transform_5(%arg0: i32) -> (i32, i32) {
    %c0_i32 = arith.constant 0 : i32
    %c0_i32_0 = arith.constant 0 : i32
    %c0_i32_1 = arith.constant 0 : i32
    return %c0_i32, %c0_i32_0 : i32, i32
  }
  func.func @transform_6(%arg0: i32) -> (i32, i32) {
    %c0_i32 = arith.constant 0 : i32
    %c0_i32_0 = arith.constant 0 : i32
    %c0_i32_1 = arith.constant 0 : i32
    return %c0_i32, %c0_i32_0 : i32, i32
  }
  func.func @transform_7(%arg0: i32) -> (i32, i32) {
    %c0_i32 = arith.constant 0 : i32
    %c0_i32_0 = arith.constant 0 : i32
    %c0_i32_1 = arith.constant 0 : i32
    return %c0_i32, %c0_i32_0 : i32, i32
  }
  func.func @transform_8(%arg0: i32) -> (i32, i32) {
    %c0_i32 = arith.constant 0 : i32
    %c0_i32_0 = arith.constant 0 : i32
    %c0_i32_1 = arith.constant 0 : i32
    return %c0_i32, %c0_i32_0 : i32, i32
  }
  func.func @transform_9(%arg0: i32) -> (i32, i32) {
    %c0_i32 = arith.constant 0 : i32
    %c0_i32_0 = arith.constant 0 : i32
    %c0_i32_1 = arith.constant 0 : i32
    return %c0_i32, %c0_i32_0 : i32, i32
  }
  func.func @transform_10(%arg0: i32) -> (i32, i32) {
    %c0_i32 = arith.constant 0 : i32
    %c0_i32_0 = arith.constant 0 : i32
    %c0_i32_1 = arith.constant 0 : i32
    return %c0_i32, %c0_i32_0 : i32, i32
  }
  func.func @transform_11(%arg0: i32) -> (i32, i32) {
    %c0_i32 = arith.constant 0 : i32
    %c0_i32_0 = arith.constant 0 : i32
    return %arg0, %c0_i32 : i32, i32
  }
}

</mosaic_0001>

<llo_original>
// kernel: tpu_custom_call.1
$region0: #{tpu_custom_call.1}
  #allocation0 [shape = 'u32[]', space=smem, size = 0x4, offset = 0x4, fixed_abs, tag = 'smem constant byte address 0x4 - core index']
  #allocation1 [shape = 'u32[144,128]{1,0:T(1,128)}', space=vmem, size = 0x12000, scoped, tag = 'internal scratch']
  %s0 = inlined_call_operand.hbm [shape: bf16[32,128], index: 0, kind: input, shape index: {}]
  %s1 = inlined_call_operand.hbm [shape: bf16[128,512], index: 1, kind: input, shape index: {}]
  %s2 = inlined_call_operand.vmem [shape: f32[1,512], index: 2, kind: input, shape index: {}]
  %s3 = inlined_call_operand.hbm [shape: bf16[512,256], index: 3, kind: input, shape index: {}]
  %s4 = inlined_call_operand.vmem [shape: f32[1,256], index: 4, kind: input, shape index: {}]
  %s5 = inlined_call_operand.hbm [shape: bf16[256,128], index: 5, kind: input, shape index: {}]
  %s6 = inlined_call_operand.vmem [shape: f32[1,128], index: 6, kind: input, shape index: {}]
  %s7 = inlined_call_operand.hbm [shape: bf16[128,128], index: 7, kind: input, shape index: {}]
  %s8 = inlined_call_operand.vmem [shape: f32[1,128], index: 8, kind: input, shape index: {}]
  %s9 = inlined_call_operand.hbm [shape: bf16[128,128], index: 9, kind: input, shape index: {}]
  %s10 = inlined_call_operand.vmem [shape: f32[1,128], index: 10, kind: input, shape index: {}]
  %s11 = inlined_call_operand.hbm [shape: bf16[32,128], index: 11, kind: output, shape index: {}]
  %s12 = sld [smem:[#allocation0]]
  $region101: #{tpu_custom_call.1} parent=0
    _
  %s14 = ssub.s32 1, %s12
  %s15 = scalar_select 0, %s14, %s12
  $region1: #{tpu_custom_call.1} parent=0
    #allocation2 [shape = 'u8[8192]{0}', space=vmem, size = 0x2000, scoped, tag = 'input window, operand 0']
    #allocation3 [shape = 's32[2]{0}', space=sflag, size = 0x8, scoped, tag = 'scoped memory for tpu_custom_call.1']
    #allocation4 [shape = 's32[2]{0}', space=sflag, size = 0x8, scoped, tag = 'scoped memory for tpu_custom_call.1']
    #allocation5 [shape = 'u8[131072]{0}', space=vmem, size = 0x20000, scoped, tag = 'input window, operand 1, single buffered']
    #allocation6 [shape = 's32[1]{0}', space=sflag, size = 0x4, scoped, tag = 'scoped memory for tpu_custom_call.1']
    #allocation7 [shape = 'u8[262144]{0}', space=vmem, size = 0x40000, scoped, tag = 'input window, operand 3, single buffered']
    #allocation8 [shape = 'u8[65536]{0}', space=vmem, size = 0x10000, scoped, tag = 'input window, operand 5, single buffered']
    #allocation9 [shape = 's32[1]{0}', space=sflag, size = 0x4, scoped, tag = 'scoped memory for tpu_custom_call.1']
    #allocation10 [shape = 'u8[32768]{0}', space=vmem, size = 0x8000, scoped, tag = 'input window, operand 7, single buffered']
    #allocation11 [shape = 'u8[32768]{0}', space=vmem, size = 0x8000, scoped, tag = 'input window, operand 9, single buffered']
    #allocation12 [shape = 's32[1]{0}', space=sflag, size = 0x4, scoped, tag = 'scoped memory for tpu_custom_call.1']
    #allocation13 [shape = 'u8[8192]{0}', space=vmem, size = 0x2000, scoped, tag = 'output window, operand 0']
    %16 = vsyncpa [#allocation3], 0
    %s17 = scalar_lea.sflag [#allocation3], 1
    %18 = vsyncpa %s17, 0
    %19 = vsyncpa [#allocation6], 0
    %20 = vsyncpa [#allocation9], 0
    %21 = vsyncpa [#allocation12], 0
    %22 = vsyncpa [#allocation4], 0
    %s23 = scalar_lea.sflag [#allocation4], 1
    %24 = vsyncpa %s23, 0
    loop: start=0, step=1, limit=4
    $region2: #{tpu_custom_call.1} parent=1 // loop_pre_header
      _
    $region3: #{tpu_custom_call.1} parent=1 // loop_header
      %s26 = sphi 0, %s30
      %p27 = scmp.ge.s32.totalorder %s26, 4
      %s36 = sphi 0, %s38
      %s39 = sphi 0, %s36
      %s40 = sphi 0, %s39
      %s56 = sphi 0, %s40
      %s60 = sphi 0, %s60
      %s62 = sphi 0, %s60
      %s63 = sphi 0, %s62
      %s77 = sphi 0, %s63
      %s81 = sphi 0, %s81
      %s83 = sphi 0, %s81
      %s84 = sphi 0, %s83
      %s98 = sphi 0, %s84
      %s102 = sphi 0, %s102
      %s104 = sphi 0, %s102
      %s105 = sphi 0, %s104
      %s119 = sphi 0, %s105
      %s123 = sphi 0, %s123
      %s125 = sphi 0, %s123
      %s126 = sphi 0, %s125
      %s140 = sphi 0, %s126
      %s144 = sphi 0, %s144
      %s146 = sphi 0, %s144
      %s147 = sphi 0, %s146
      %s161 = sphi 0, %s147
      %s165 = sphi 0, %s165
      %s167 = sphi 0, %s165
      %s168 = sphi 0, %s167
      %s182 = sphi 0, %s168
      %s186 = sphi 0, %s186
      %s188 = sphi 0, %s186
      %s189 = sphi 0, %s188
      %s203 = sphi 0, %s189
      %s207 = sphi 0, %s207
      %s209 = sphi 0, %s207
      %s210 = sphi 0, %s209
      %s224 = sphi 0, %s210
      %s228 = sphi 0, %s228
      %s230 = sphi 0, %s228
      %s231 = sphi 0, %s230
      %s245 = sphi 0, %s231
      %s249 = sphi 0, %s249
      %s251 = sphi 0, %s249
      %s252 = sphi 0, %s251
      %s266 = sphi 0, %s252
      %s272 = sphi 0, %s274
      %s275 = sphi 0, %s272
      %s276 = sphi 0, %s275
      %s292 = sphi 0, %s276
    $region4: #{tpu_custom_call.1} parent=1 // loop_header_branch
      %29 = sbr.rel (%p27) target = $region8
    $region5: #{tpu_custom_call.1} parent=1 // loop_body
      %s31 = ssub.s32 %s26, 1
      %s32 = ssub.s32 %s26, 2
      %s33 = sadd.s32 %s26, 1
      %s34 = ssub.s32 %s26, %s33
      %p35 = scmp.eq.s32.totalorder %s34, 0
      %s37 = sadd.s32 %s36, 1
      %s38 = scalar_select %p35, %s36, %s37
      %p41 = pneg %p35
      %p42 = scmp.eq.s32.totalorder %s26, 1
      %p43 = por %p41, %p42
      %p44 = scmp.ne.s32.totalorder %s36, %s39
      %p45 = scmp.eq.s32.totalorder %s26, 0
      %p46 = por %p44, %p45
      %p47 = scmp.ne.s32.totalorder %s36, %s39
      %p48 = scmp.eq.s32.totalorder %s31, 1
      %p49 = por %p47, %p48
      %p50 = scmp.ne.s32.totalorder %s39, %s40
      %p51 = scmp.eq.s32.totalorder %s31, 0
      %p52 = por %p50, %p51
      %p53 = scmp.ne.s32.totalorder %s39, %s40
      %p54 = scmp.eq.s32.totalorder %s32, 1
      %p55 = por %p53, %p54
      %p57 = scmp.ne.s32.totalorder %s40, %s56
      %p58 = scmp.eq.s32.totalorder %s32, 0
      %p59 = por %p57, %p58
      %s61 = sadd.s32 %s60, 1
      %p64 = scmp.eq.s32.totalorder %s26, 1
      %p65 = scmp.ne.s32.totalorder %s60, %s62
      %p66 = scmp.eq.s32.totalorder %s26, 0
      %p67 = por %p65, %p66
      %p68 = scmp.ne.s32.totalorder %s60, %s62
      %p69 = scmp.eq.s32.totalorder %s31, 1
      %p70 = por %p68, %p69
      %p71 = scmp.ne.s32.totalorder %s62, %s63
      %p72 = scmp.eq.s32.totalorder %s31, 0
      %p73 = por %p71, %p72
      %p74 = scmp.ne.s32.totalorder %s62, %s63
      %p75 = scmp.eq.s32.totalorder %s32, 1
      %p76 = por %p74, %p75
      %p78 = scmp.ne.s32.totalorder %s63, %s77
      %p79 = scmp.eq.s32.totalorder %s32, 0
      %p80 = por %p78, %p79
      %s82 = sadd.s32 %s81, 1
      %p85 = scmp.eq.s32.totalorder %s26, 1
      %p86 = scmp.ne.s32.totalorder %s81, %s83
      %p87 = scmp.eq.s32.totalorder %s26, 0
      %p88 = por %p86, %p87
      %p89 = scmp.ne.s32.totalorder %s81, %s83
      %p90 = scmp.eq.s32.totalorder %s31, 1
      %p91 = por %p89, %p90
      %p92 = scmp.ne.s32.totalorder %s83, %s84
      %p93 = scmp.eq.s32.totalorder %s31, 0
      %p94 = por %p92, %p93
      %p95 = scmp.ne.s32.totalorder %s83, %s84
      %p96 = scmp.eq.s32.totalorder %s32, 1
      %p97 = por %p95, %p96
      %p99 = scmp.ne.s32.totalorder %s84, %s98
      %p100 = scmp.eq.s32.totalorder %s32, 0
      %p101 = por %p99, %p100
      %s103 = sadd.s32 %s102, 1
      %p106 = scmp.eq.s32.totalorder %s26, 1
      %p107 = scmp.ne.s32.totalorder %s102, %s104
      %p108 = scmp.eq.s32.totalorder %s26, 0
      %p109 = por %p107, %p108
      %p110 = scmp.ne.s32.totalorder %s102, %s104
      %p111 = scmp.eq.s32.totalorder %s31, 1
      %p112 = por %p110, %p111
      %p113 = scmp.ne.s32.totalorder %s104, %s105
      %p114 = scmp.eq.s32.totalorder %s31, 0
      %p115 = por %p113, %p114
      %p116 = scmp.ne.s32.totalorder %s104, %s105
      %p117 = scmp.eq.s32.totalorder %s32, 1
      %p118 = por %p116, %p117
      %p120 = scmp.ne.s32.totalorder %s105, %s119
      %p121 = scmp.eq.s32.totalorder %s32, 0
      %p122 = por %p120, %p121
      %s124 = sadd.s32 %s123, 1
      %p127 = scmp.eq.s32.totalorder %s26, 1
      %p128 = scmp.ne.s32.totalorder %s123, %s125
      %p129 = scmp.eq.s32.totalorder %s26, 0
      %p130 = por %p128, %p129
      %p131 = scmp.ne.s32.totalorder %s123, %s125
      %p132 = scmp.eq.s32.totalorder %s31, 1
      %p133 = por %p131, %p132
      %p134 = scmp.ne.s32.totalorder %s125, %s126
      %p135 = scmp.eq.s32.totalorder %s31, 0
      %p136 = por %p134, %p135
      %p137 = scmp.ne.s32.totalorder %s125, %s126
      %p138 = scmp.eq.s32.totalorder %s32, 1
      %p139 = por %p137, %p138
      %p141 = scmp.ne.s32.totalorder %s126, %s140
      %p142 = scmp.eq.s32.totalorder %s32, 0
      %p143 = por %p141, %p142
      %s145 = sadd.s32 %s144, 1
      %p148 = scmp.eq.s32.totalorder %s26, 1
      %p149 = scmp.ne.s32.totalorder %s144, %s146
      %p150 = scmp.eq.s32.totalorder %s26, 0
      %p151 = por %p149, %p150
      %p152 = scmp.ne.s32.totalorder %s144, %s146
      %p153 = scmp.eq.s32.totalorder %s31, 1
      %p154 = por %p152, %p153
      %p155 = scmp.ne.s32.totalorder %s146, %s147
      %p156 = scmp.eq.s32.totalorder %s31, 0
      %p157 = por %p155, %p156
      %p158 = scmp.ne.s32.totalorder %s146, %s147
      %p159 = scmp.eq.s32.totalorder %s32, 1
      %p160 = por %p158, %p159
      %p162 = scmp.ne.s32.totalorder %s147, %s161
      %p163 = scmp.eq.s32.totalorder %s32, 0
      %p164 = por %p162, %p163
      %s166 = sadd.s32 %s165, 1
      %p169 = scmp.eq.s32.totalorder %s26, 1
      %p170 = scmp.ne.s32.totalorder %s165, %s167
      %p171 = scmp.eq.s32.totalorder %s26, 0
      %p172 = por %p170, %p171
      %p173 = scmp.ne.s32.totalorder %s165, %s167
      %p174 = scmp.eq.s32.totalorder %s31, 1
      %p175 = por %p173, %p174
      %p176 = scmp.ne.s32.totalorder %s167, %s168
      %p177 = scmp.eq.s32.totalorder %s31, 0
      %p178 = por %p176, %p177
      %p179 = scmp.ne.s32.totalorder %s167, %s168
      %p180 = scmp.eq.s32.totalorder %s32, 1
      %p181 = por %p179, %p180
      %p183 = scmp.ne.s32.totalorder %s168, %s182
      %p184 = scmp.eq.s32.totalorder %s32, 0
      %p185 = por %p183, %p184
      %s187 = sadd.s32 %s186, 1
      %p190 = scmp.eq.s32.totalorder %s26, 1
      %p191 = scmp.ne.s32.totalorder %s186, %s188
      %p192 = scmp.eq.s32.totalorder %s26, 0
      %p193 = por %p191, %p192
      %p194 = scmp.ne.s32.totalorder %s186, %s188
      %p195 = scmp.eq.s32.totalorder %s31, 1
      %p196 = por %p194, %p195
      %p197 = scmp.ne.s32.totalorder %s188, %s189
      %p198 = scmp.eq.s32.totalorder %s31, 0
      %p199 = por %p197, %p198
      %p200 = scmp.ne.s32.totalorder %s188, %s189
      %p201 = scmp.eq.s32.totalorder %s32, 1
      %p202 = por %p200, %p201
      %p204 = scmp.ne.s32.totalorder %s189, %s203
      %p205 = scmp.eq.s32.totalorder %s32, 0
      %p206 = por %p204, %p205
      %s208 = sadd.s32 %s207, 1
      %p211 = scmp.eq.s32.totalorder %s26, 1
      %p212 = scmp.ne.s32.totalorder %s207, %s209
      %p213 = scmp.eq.s32.totalorder %s26, 0
      %p214 = por %p212, %p213
      %p215 = scmp.ne.s32.totalorder %s207, %s209
      %p216 = scmp.eq.s32.totalorder %s31, 1
      %p217 = por %p215, %p216
      %p218 = scmp.ne.s32.totalorder %s209, %s210
      %p219 = scmp.eq.s32.totalorder %s31, 0
      %p220 = por %p218, %p219
      %p221 = scmp.ne.s32.totalorder %s209, %s210
      %p222 = scmp.eq.s32.totalorder %s32, 1
      %p223 = por %p221, %p222
      %p225 = scmp.ne.s32.totalorder %s210, %s224
      %p226 = scmp.eq.s32.totalorder %s32, 0
      %p227 = por %p225, %p226
      %s229 = sadd.s32 %s228, 1
      %p232 = scmp.eq.s32.totalorder %s26, 1
      %p233 = scmp.ne.s32.totalorder %s228, %s230
      %p234 = scmp.eq.s32.totalorder %s26, 0
      %p235 = por %p233, %p234
      %p236 = scmp.ne.s32.totalorder %s228, %s230
      %p237 = scmp.eq.s32.totalorder %s31, 1
      %p238 = por %p236, %p237
      %p239 = scmp.ne.s32.totalorder %s230, %s231
      %p240 = scmp.eq.s32.totalorder %s31, 0
      %p241 = por %p239, %p240
      %p242 = scmp.ne.s32.totalorder %s230, %s231
      %p243 = scmp.eq.s32.totalorder %s32, 1
      %p244 = por %p242, %p243
      %p246 = scmp.ne.s32.totalorder %s231, %s245
      %p247 = scmp.eq.s32.totalorder %s32, 0
      %p248 = por %p246, %p247
      %s250 = sadd.s32 %s249, 1
      %p253 = scmp.eq.s32.totalorder %s26, 1
      %p254 = scmp.ne.s32.totalorder %s249, %s251
      %p255 = scmp.eq.s32.totalorder %s26, 0
      %p256 = por %p254, %p255
      %p257 = scmp.ne.s32.totalorder %s249, %s251
      %p258 = scmp.eq.s32.totalorder %s31, 1
      %p259 = por %p257, %p258
      %p260 = scmp.ne.s32.totalorder %s251, %s252
      %p261 = scmp.eq.s32.totalorder %s31, 0
      %p262 = por %p260, %p261
      %p263 = scmp.ne.s32.totalorder %s251, %s252
      %p264 = scmp.eq.s32.totalorder %s32, 1
      %p265 = por %p263, %p264
      %p267 = scmp.ne.s32.totalorder %s252, %s266
      %p268 = scmp.eq.s32.totalorder %s32, 0
      %p269 = por %p267, %p268
      %s270 = ssub.s32 %s26, %s33
      %p271 = scmp.eq.s32.totalorder %s270, 0
      %s273 = sadd.s32 %s272, 1
      %s274 = scalar_select %p271, %s272, %s273
      %p277 = pneg %p271
      %p278 = scmp.eq.s32.totalorder %s26, 1
      %p279 = por %p277, %p278
      %p280 = scmp.ne.s32.totalorder %s272, %s275
      %p281 = scmp.eq.s32.totalorder %s26, 0
      %p282 = por %p280, %p281
      %p283 = scmp.ne.s32.totalorder %s272, %s275
      %p284 = scmp.eq.s32.totalorder %s31, 1
      %p285 = por %p283, %p284
      %p286 = scmp.ne.s32.totalorder %s275, %s276
      %p287 = scmp.eq.s32.totalorder %s31, 0
      %p288 = por %p286, %p287
      %p289 = scmp.ne.s32.totalorder %s275, %s276
      %p290 = scmp.eq.s32.totalorder %s32, 1
      %p291 = por %p289, %p290
      %p293 = scmp.ne.s32.totalorder %s276, %s292
      %p294 = scmp.eq.s32.totalorder %s32, 0
      %p295 = por %p293, %p294
      %p296 = scmp.le.s32.totalorder 1, %s26
      %p297 = scmp.lt.s32.totalorder %s26, 3
      %p298 = pnand %p296, %p297
      %p299 = pneg %p298
      // Predicated region
      $region9: #{tpu_custom_call.1} parent=5 // pred_check
        _
      $region10: #{tpu_custom_call.1} parent=5 // pred_check_branch
        %301 = sbr.rel (%p298) target = $region12
      $region11: #{tpu_custom_call.1} parent=5 // pred_region
        %s302 = ssub.s32 %s26, 1
        // Predicated region
        $region13: #{tpu_custom_call.1} parent=11 // pred_check
          %p303 = pneg %p73
        $region14: #{tpu_custom_call.1} parent=11 // pred_check_branch
          %305 = sbr.rel (%p303) target = $region16
        $region15: #{tpu_custom_call.1} parent=11 // pred_region
          %s307 = ssub.s32 4096, 4096
          %308 = vsyncadd [#allocation6], %s307
          %s309 = sshll.u32 [#allocation5], 4
          %s310 = int_to_ptr.vmem [resolvable:$true] %s309
          %315 = dma.hbm_to_vmem [thread:$0]  %s1, 4096, %s310, [#allocation6], 256, 256, 16
        $region16: #{tpu_custom_call.1} parent=11 // pred_fallthru
          _
        // Predicated region
        $region17: #{tpu_custom_call.1} parent=11 // pred_check
          %p316 = pneg %p94
        $region18: #{tpu_custom_call.1} parent=11 // pred_check_branch
          %318 = sbr.rel (%p316) target = $region20
        $region19: #{tpu_custom_call.1} parent=11 // pred_region
          _
        $region20: #{tpu_custom_call.1} parent=11 // pred_fallthru
          _
        // Predicated region
        $region21: #{tpu_custom_call.1} parent=11 // pred_check
          %p319 = pneg %p115
        $region22: #{tpu_custom_call.1} parent=11 // pred_check_branch
          %321 = sbr.rel (%p319) target = $region24
        $region23: #{tpu_custom_call.1} parent=11 // pred_region
          %s323 = ssub.s32 8192, 8192
          %324 = vsyncadd [#allocation6], %s323
          %s325 = sshll.u32 [#allocation7], 4
          %s326 = int_to_ptr.vmem [resolvable:$true] %s325
          %331 = dma.hbm_to_vmem [thread:$0]  %s3, 8192, %s326, [#allocation6], 128, 128, 8
        $region24: #{tpu_custom_call.1} parent=11 // pred_fallthru
          _
        // Predicated region
        $region25: #{tpu_custom_call.1} parent=11 // pred_check
          %p332 = pneg %p136
        $region26: #{tpu_custom_call.1} parent=11 // pred_check_branch
          %334 = sbr.rel (%p332) target = $region28
        $region27: #{tpu_custom_call.1} parent=11 // pred_region
          _
        $region28: #{tpu_custom_call.1} parent=11 // pred_fallthru
          _
        // Predicated region
        $region29: #{tpu_custom_call.1} parent=11 // pred_check
          %p335 = pneg %p157
        $region30: #{tpu_custom_call.1} parent=11 // pred_check_branch
          %337 = sbr.rel (%p335) target = $region32
        $region31: #{tpu_custom_call.1} parent=11 // pred_region
          %s339 = ssub.s32 2048, 2048
          %340 = vsyncadd [#allocation9], %s339
          %s341 = sshll.u32 [#allocation8], 4
          %s342 = int_to_ptr.vmem [resolvable:$true] %s341
          %347 = dma.hbm_to_vmem [thread:$0]  %s5, 2048, %s342, [#allocation9], 64, 64, 4
        $region32: #{tpu_custom_call.1} parent=11 // pred_fallthru
          _
        // Predicated region
        $region33: #{tpu_custom_call.1} parent=11 // pred_check
          %p348 = pneg %p178
        $region34: #{tpu_custom_call.1} parent=11 // pred_check_branch
          %350 = sbr.rel (%p348) target = $region36
        $region35: #{tpu_custom_call.1} parent=11 // pred_region
          _
        $region36: #{tpu_custom_call.1} parent=11 // pred_fallthru
          _
        // Predicated region
        $region37: #{tpu_custom_call.1} parent=11 // pred_check
          %p351 = pneg %p199
        $region38: #{tpu_custom_call.1} parent=11 // pred_check_branch
          %353 = sbr.rel (%p351) target = $region40
        $region39: #{tpu_custom_call.1} parent=11 // pred_region
          %s355 = ssub.s32 1024, 1024
          %356 = vsyncadd [#allocation9], %s355
          %s357 = sshll.u32 [#allocation10], 4
          %s358 = int_to_ptr.vmem [resolvable:$true] %s357
          %363 = dma.hbm_to_vmem [thread:$0]  %s7, 1024, %s358, [#allocation9], 64, 64, 4
        $region40: #{tpu_custom_call.1} parent=11 // pred_fallthru
          _
        // Predicated region
        $region41: #{tpu_custom_call.1} parent=11 // pred_check
          %p364 = pneg %p220
        $region42: #{tpu_custom_call.1} parent=11 // pred_check_branch
          %366 = sbr.rel (%p364) target = $region44
        $region43: #{tpu_custom_call.1} parent=11 // pred_region
          _
        $region44: #{tpu_custom_call.1} parent=11 // pred_fallthru
          _
        // Predicated region
        $region45: #{tpu_custom_call.1} parent=11 // pred_check
          %p367 = pneg %p241
        $region46: #{tpu_custom_call.1} parent=11 // pred_check_branch
          %369 = sbr.rel (%p367) target = $region48
        $region47: #{tpu_custom_call.1} parent=11 // pred_region
          %s371 = ssub.s32 1024, 1024
          %372 = vsyncadd [#allocation12], %s371
          %s373 = sshll.u32 [#allocation11], 4
          %s374 = int_to_ptr.vmem [resolvable:$true] %s373
          %379 = dma.hbm_to_vmem [thread:$0]  %s9, 1024, %s374, [#allocation12], 64, 64, 4
        $region48: #{tpu_custom_call.1} parent=11 // pred_fallthru
          _
        // Predicated region
        $region49: #{tpu_custom_call.1} parent=11 // pred_check
          %p380 = pneg %p262
        $region50: #{tpu_custom_call.1} parent=11 // pred_check_branch
          %382 = sbr.rel (%p380) target = $region52
        $region51: #{tpu_custom_call.1} parent=11 // pred_region
          _
        $region52: #{tpu_custom_call.1} parent=11 // pred_fallthru
          _
      $region12: #{tpu_custom_call.1} parent=5 // pred_fallthru
        _
      %p383 = scmp.lt.s32.totalorder %s26, 2
      // Predicated region
      $region53: #{tpu_custom_call.1} parent=5 // pred_check
        %p384 = pneg %p383
      $region54: #{tpu_custom_call.1} parent=5 // pred_check_branch
        %386 = sbr.rel (%p384) target = $region56
      $region55: #{tpu_custom_call.1} parent=5 // pred_region
        // Predicated region
        $region57: #{tpu_custom_call.1} parent=55 // pred_check
          %p387 = pneg %p46
        $region58: #{tpu_custom_call.1} parent=55 // pred_check_branch
          %389 = sbr.rel (%p387) target = $region60
        $region59: #{tpu_custom_call.1} parent=55 // pred_region
          %s390 = sand.u32 %s36, 1
          %s391 = scalar_lea.sflag [#allocation3], %s390
          %s392 = sand.u32 %s36, 1
          %s393 = smul.addr %s392, 8
          %s394 = scalar_lea.vmem [#allocation2], %s393
          %s395 = smul.u32 2, %s26
          %s397 = ssub.s32 128, 128
          %398 = vsyncadd %s391, %s397
          %s399 = smul.addr %s395, 64
          %s400 = scalar_lea.hbm %s0, %s399
          %s401 = sshll.u32 %s394, 4
          %s402 = int_to_ptr.vmem [resolvable:$true] %s401
          %407 = dma.hbm_to_vmem [thread:$0]  %s400, 128, %s402, %s391, 64, 64, 4
        $region60: #{tpu_custom_call.1} parent=55 // pred_fallthru
          _
      $region56: #{tpu_custom_call.1} parent=5 // pred_fallthru
        _
      %p408 = scmp.le.s32.totalorder 1, %s26
      %p409 = scmp.lt.s32.totalorder %s26, 3
      %p410 = pnand %p408, %p409
      %p411 = pneg %p410
      // Predicated region
      $region61: #{tpu_custom_call.1} parent=5 // pred_check
        _
      $region62: #{tpu_custom_call.1} parent=5 // pred_check_branch
        %413 = sbr.rel (%p410) target = $region64
      $region63: #{tpu_custom_call.1} parent=5 // pred_region
        %s414 = ssub.s32 %s26, 1
        %s415 = sand.u32 %s39, 1
        %s416 = scalar_lea.sflag [#allocation3], %s415
        %s417 = sand.u32 %s39, 1
        %s418 = smul.addr %s417, 8
        %s419 = scalar_lea.vmem [#allocation2], %s418
        // Predicated region
        $region65: #{tpu_custom_call.1} parent=63 // pred_check
          %p420 = pneg %p52
        $region66: #{tpu_custom_call.1} parent=63 // pred_check_branch
          %422 = sbr.rel (%p420) target = $region68
        $region67: #{tpu_custom_call.1} parent=63 // pred_region
          %423 = dma.done %s416, 128
        $region68: #{tpu_custom_call.1} parent=63 // pred_fallthru
          _
        // Predicated region
        $region69: #{tpu_custom_call.1} parent=63 // pred_check
          %p424 = pneg %p73
        $region70: #{tpu_custom_call.1} parent=63 // pred_check_branch
          %426 = sbr.rel (%p424) target = $region72
        $region71: #{tpu_custom_call.1} parent=63 // pred_region
          %427 = dma.done [#allocation6], 4096
        $region72: #{tpu_custom_call.1} parent=63 // pred_fallthru
          _
        // Predicated region
        $region73: #{tpu_custom_call.1} parent=63 // pred_check
          %p428 = pneg %p115
        $region74: #{tpu_custom_call.1} parent=63 // pred_check_branch
          %430 = sbr.rel (%p428) target = $region76
        $region75: #{tpu_custom_call.1} parent=63 // pred_region
          %431 = dma.done [#allocation6], 8192
        $region76: #{tpu_custom_call.1} parent=63 // pred_fallthru
          _
        // Predicated region
        $region77: #{tpu_custom_call.1} parent=63 // pred_check
          %p432 = pneg %p157
        $region78: #{tpu_custom_call.1} parent=63 // pred_check_branch
          %434 = sbr.rel (%p432) target = $region80
        $region79: #{tpu_custom_call.1} parent=63 // pred_region
          %435 = dma.done [#allocation9], 2048
        $region80: #{tpu_custom_call.1} parent=63 // pred_fallthru
          _
        // Predicated region
        $region81: #{tpu_custom_call.1} parent=63 // pred_check
          %p436 = pneg %p199
        $region82: #{tpu_custom_call.1} parent=63 // pred_check_branch
          %438 = sbr.rel (%p436) target = $region84
        $region83: #{tpu_custom_call.1} parent=63 // pred_region
          %439 = dma.done [#allocation9], 1024
        $region84: #{tpu_custom_call.1} parent=63 // pred_fallthru
          _
        // Predicated region
        $region85: #{tpu_custom_call.1} parent=63 // pred_check
          %p440 = pneg %p241
        $region86: #{tpu_custom_call.1} parent=63 // pred_check_branch
          %442 = sbr.rel (%p440) target = $region88
        $region87: #{tpu_custom_call.1} parent=63 // pred_region
          %443 = dma.done [#allocation12], 1024
        $region88: #{tpu_custom_call.1} parent=63 // pred_fallthru
          _
        %s444 = sand.u32 %s39, 1
        %s445 = scalar_lea.sflag [#allocation3], %s444
        %s446 = sand.u32 %s39, 1
        %s447 = smul.addr %s446, 8
        %s448 = scalar_lea.vmem [#allocation2], %s447
        %p449 = pneg %p52
        %p450 = pneg %p49
        %p451 = pneg %p73
        %p452 = pneg %p70
        %p453 = pneg %p94
        %p454 = pneg %p91
        %p455 = pneg %p115
        %p456 = pneg %p112
        %p457 = pneg %p136
        %p458 = pneg %p133
        %p459 = pneg %p157
        %p460 = pneg %p154
        %p461 = pneg %p178
        %p462 = pneg %p175
        %p463 = pneg %p199
        %p464 = pneg %p196
        %p465 = pneg %p220
        %p466 = pneg %p217
        %p467 = pneg %p241
        %p468 = pneg %p238
        %p469 = pneg %p262
        %p470 = pneg %p259
        %p471 = pneg %p288
        %p472 = pneg %p285
        %s473 = sand.u32 %s275, 1
        %s474 = scalar_lea.sflag [#allocation4], %s473
        %s475 = sand.u32 %s275, 1
        %s476 = smul.addr %s475, 8
        %s477 = scalar_lea.vmem [#allocation13], %s476
        %s478 = smul.u32 2, %s31
        %s479 = smul.u32 2, %s31
        %v481 = vld [vmem:[%s419] sm:$0xf]
        %v482 = vld [vmem:[%s419 + $0x4] sm:$0xf]
        %v483 = vld [vmem:[#allocation5] sm:$0xff]
        %v484 = vld [vmem:[#allocation5 + $0x8] sm:$0xff]
        %v485 = vld [vmem:[#allocation5 + $0x10] sm:$0xff]
        %v486 = vld [vmem:[#allocation5 + $0x18] sm:$0xff]
        %v487 = vld [vmem:[#allocation5 + $0x20] sm:$0xff]
        %v488 = vld [vmem:[#allocation5 + $0x28] sm:$0xff]
        %v489 = vld [vmem:[#allocation5 + $0x30] sm:$0xff]
        %v490 = vld [vmem:[#allocation5 + $0x38] sm:$0xff]
        %v491 = vld [vmem:[#allocation5 + $0x40] sm:$0xff]
        %v492 = vld [vmem:[#allocation5 + $0x48] sm:$0xff]
        %v493 = vld [vmem:[#allocation5 + $0x50] sm:$0xff]
        %v494 = vld [vmem:[#allocation5 + $0x58] sm:$0xff]
        %v495 = vld [vmem:[#allocation5 + $0x60] sm:$0xff]
        %v496 = vld [vmem:[#allocation5 + $0x68] sm:$0xff]
        %v497 = vld [vmem:[#allocation5 + $0x70] sm:$0xff]
        %v498 = vld [vmem:[#allocation5 + $0x78] sm:$0xff]
        %v499 = vld [vmem:[#allocation5 + $0x80] sm:$0xff]
        %v500 = vld [vmem:[#allocation5 + $0x88] sm:$0xff]
        %v501 = vld [vmem:[#allocation5 + $0x90] sm:$0xff]
        %v502 = vld [vmem:[#allocation5 + $0x98] sm:$0xff]
        %v503 = vld [vmem:[#allocation5 + $0xa0] sm:$0xff]
        %v504 = vld [vmem:[#allocation5 + $0xa8] sm:$0xff]
        %v505 = vld [vmem:[#allocation5 + $0xb0] sm:$0xff]
        %v506 = vld [vmem:[#allocation5 + $0xb8] sm:$0xff]
        %v507 = vld [vmem:[#allocation5 + $0xc0] sm:$0xff]
        %v508 = vld [vmem:[#allocation5 + $0xc8] sm:$0xff]
        %v509 = vld [vmem:[#allocation5 + $0xd0] sm:$0xff]
        %v510 = vld [vmem:[#allocation5 + $0xd8] sm:$0xff]
        %v511 = vld [vmem:[#allocation5 + $0xe0] sm:$0xff]
        %v512 = vld [vmem:[#allocation5 + $0xe8] sm:$0xff]
        %v513 = vld [vmem:[#allocation5 + $0xf0] sm:$0xff]
        %v514 = vld [vmem:[#allocation5 + $0xf8] sm:$0xff]
        %v515 = vld [vmem:[%s2] sm:$0xf]
        %v517 = vlaneseq
        %v518 = vshrl.u32 %v517, 7
        %v519 = vsub.s32 0, %v518
        %v520 = vrot.slane %v515, %v519
        %v521 = vlaneseq
        %v522 = vshrl.u32 %v521, 7
        %v523 = vsub.s32 1, %v522
        %v524 = vrot.slane %v515, %v523
        %v525 = vlaneseq
        %v526 = vshrl.u32 %v525, 7
        %v527 = vsub.s32 2, %v526
        %v528 = vrot.slane %v515, %v527
        %v529 = vlaneseq
        %v530 = vshrl.u32 %v529, 7
        %v531 = vsub.s32 3, %v530
        %v532 = vrot.slane %v515, %v531
        %v539 = vunpack.c.l.b16 %v481
        %v540 = vunpack.c.l.b16 %v482
        %v541 = vpack.c.b16 %v540, %v539
        %v575 = vunpack.c.l.b16 %v483
        %v576 = vunpack.c.h.b16 %v483
        %v577 = vunpack.c.l.b16 %v484
        %v578 = vunpack.c.h.b16 %v484
        %v579 = vunpack.c.l.b16 %v485
        %v580 = vunpack.c.h.b16 %v485
        %v581 = vunpack.c.l.b16 %v486
        %v582 = vunpack.c.h.b16 %v486
        %v583 = vunpack.c.l.b16 %v487
        %v584 = vunpack.c.h.b16 %v487
        %v585 = vunpack.c.l.b16 %v488
        %v586 = vunpack.c.h.b16 %v488
        %v587 = vunpack.c.l.b16 %v489
        %v588 = vunpack.c.h.b16 %v489
        %v589 = vunpack.c.l.b16 %v490
        %v590 = vunpack.c.h.b16 %v490
        %v591 = vunpack.c.l.b16 %v491
        %v592 = vunpack.c.h.b16 %v491
        %v593 = vunpack.c.l.b16 %v492
        %v594 = vunpack.c.h.b16 %v492
        %v595 = vunpack.c.l.b16 %v493
        %v596 = vunpack.c.h.b16 %v493
        %v597 = vunpack.c.l.b16 %v494
        %v598 = vunpack.c.h.b16 %v494
        %v599 = vunpack.c.l.b16 %v495
        %v600 = vunpack.c.h.b16 %v495
        %v601 = vunpack.c.l.b16 %v496
        %v602 = vunpack.c.h.b16 %v496
        %v603 = vunpack.c.l.b16 %v497
        %v604 = vunpack.c.h.b16 %v497
        %v605 = vunpack.c.l.b16 %v498
        %v606 = vunpack.c.h.b16 %v498
        %v607 = vunpack.c.l.b16 %v499
        %v608 = vunpack.c.h.b16 %v499
        %v609 = vunpack.c.l.b16 %v500
        %v610 = vunpack.c.h.b16 %v500
        %v611 = vunpack.c.l.b16 %v501
        %v612 = vunpack.c.h.b16 %v501
        %v613 = vunpack.c.l.b16 %v502
        %v614 = vunpack.c.h.b16 %v502
        %v615 = vunpack.c.l.b16 %v503
        %v616 = vunpack.c.h.b16 %v503
        %v617 = vunpack.c.l.b16 %v504
        %v618 = vunpack.c.h.b16 %v504
        %v619 = vunpack.c.l.b16 %v505
        %v620 = vunpack.c.h.b16 %v505
        %v621 = vunpack.c.l.b16 %v506
        %v622 = vunpack.c.h.b16 %v506
        %v623 = vunpack.c.l.b16 %v507
        %v624 = vunpack.c.h.b16 %v507
        %v625 = vunpack.c.l.b16 %v508
        %v626 = vunpack.c.h.b16 %v508
        %v627 = vunpack.c.l.b16 %v509
        %v628 = vunpack.c.h.b16 %v509
        %v629 = vunpack.c.l.b16 %v510
        %v630 = vunpack.c.h.b16 %v510
        %v631 = vunpack.c.l.b16 %v511
        %v632 = vunpack.c.h.b16 %v511
        %v633 = vunpack.c.l.b16 %v512
        %v634 = vunpack.c.h.b16 %v512
        %v635 = vunpack.c.l.b16 %v513
        %v636 = vunpack.c.h.b16 %v513
        %v637 = vunpack.c.l.b16 %v514
        %v638 = vunpack.c.h.b16 %v514
        %v639 = vpack.c.b16 %v579, %v575
        %v640 = vpack.c.b16 %v580, %v576
        %v641 = vpack.c.b16 %v581, %v577
        %v642 = vpack.c.b16 %v582, %v578
        %v643 = vpack.c.b16 %v587, %v583
        %v644 = vpack.c.b16 %v588, %v584
        %v645 = vpack.c.b16 %v589, %v585
        %v646 = vpack.c.b16 %v590, %v586
        %v647 = vpack.c.b16 %v595, %v591
        %v648 = vpack.c.b16 %v596, %v592
        %v649 = vpack.c.b16 %v597, %v593
        %v650 = vpack.c.b16 %v598, %v594
        %v651 = vpack.c.b16 %v603, %v599
        %v652 = vpack.c.b16 %v604, %v600
        %v653 = vpack.c.b16 %v605, %v601
        %v654 = vpack.c.b16 %v606, %v602
        %v655 = vpack.c.b16 %v611, %v607
        %v656 = vpack.c.b16 %v612, %v608
        %v657 = vpack.c.b16 %v613, %v609
        %v658 = vpack.c.b16 %v614, %v610
        %v659 = vpack.c.b16 %v619, %v615
        %v660 = vpack.c.b16 %v620, %v616
        %v661 = vpack.c.b16 %v621, %v617
        %v662 = vpack.c.b16 %v622, %v618
        %v663 = vpack.c.b16 %v627, %v623
        %v664 = vpack.c.b16 %v628, %v624
        %v665 = vpack.c.b16 %v629, %v625
        %v666 = vpack.c.b16 %v630, %v626
        %v667 = vpack.c.b16 %v635, %v631
        %v668 = vpack.c.b16 %v636, %v632
        %v669 = vpack.c.b16 %v637, %v633
        %v670 = vpack.c.b16 %v638, %v634
        %703 = vmatprep.subr.bf16.mxu0 %v640
        %704 = vmatpush1.bf16.msra.mxu0 %v639
        %705 = vmatprep.subr.bf16.mxu0 %v644
        %706 = vmatpush1.bf16.msra.mxu0 %v643
        %707 = vmatprep.subr.bf16.mxu0 %v648
        %708 = vmatpush1.bf16.msra.mxu0 %v647
        %709 = vmatprep.subr.bf16.mxu0 %v652
        %710 = vmatpush1.bf16.msra.mxu0 %v651
        %711 = vmatprep.subr.bf16.mxu0 %v656
        %712 = vmatpush1.bf16.msra.mxu0 %v655
        %713 = vmatprep.subr.bf16.mxu0 %v660
        %714 = vmatpush1.bf16.msra.mxu0 %v659
        %715 = vmatprep.subr.bf16.mxu0 %v664
        %716 = vmatpush1.bf16.msra.mxu0 %v663
        %717 = vmatprep.subr.bf16.mxu0 %v668
        %718 = vmatpush1.bf16.msra.mxu0 %v667
        %719 = vmatprep.subr.bf16.mxu0 0
        %720 = vmatpush1.bf16.msra.mxu0 0
        %721 = vmatprep.subr.bf16.mxu0 0
        %722 = vmatpush1.bf16.msra.mxu0 0
        %723 = vmatprep.subr.bf16.mxu0 0
        %724 = vmatpush1.bf16.msra.mxu0 0
        %725 = vmatprep.subr.bf16.mxu0 0
        %726 = vmatpush1.bf16.msra.mxu0 0
        %727 = vmatprep.subr.bf16.mxu0 0
        %728 = vmatpush1.bf16.msra.mxu0 0
        %729 = vmatprep.subr.bf16.mxu0 0
        %730 = vmatpush1.bf16.msra.mxu0 0
        %731 = vmatprep.subr.bf16.mxu0 0
        %732 = vmatpush1.bf16.msra.mxu0 0
        %733 = vmatprep.subr.bf16.mxu0 0
        %734 = vmatpush1.bf16.msra.mxu0 0
        %735 = vmatprep.mubr.bf16.mxu0 0
        %736 = vmatmul.mubr.bf16.gmra.mrb[0].mxu0 %v541
        %v737 = vpop.f32.mrb[0].mxu0
        %v738 = vadd.f32 %v520, %v737
        %v739 = vpop.f32.mrb[0].mxu0
        %v740 = vadd.f32 %v524, %v739
        %v741 = vpop.f32.mrb[0].mxu0
        %v742 = vadd.f32 %v520, %v741
        %v743 = vpop.f32.mrb[0].mxu0
        %v744 = vadd.f32 %v524, %v743
        %745 = vdwg.mxu0
        %746 = vmatprep.subr.bf16.mxu0 %v642
        %747 = vmatpush1.bf16.msra.mxu0 %v641
        %748 = vmatprep.subr.bf16.mxu0 %v646
        %749 = vmatpush1.bf16.msra.mxu0 %v645
        %750 = vmatprep.subr.bf16.mxu0 %v650
        %751 = vmatpush1.bf16.msra.mxu0 %v649
        %752 = vmatprep.subr.bf16.mxu0 %v654
        %753 = vmatpush1.bf16.msra.mxu0 %v653
        %754 = vmatprep.subr.bf16.mxu0 %v658
        %755 = vmatpush1.bf16.msra.mxu0 %v657
        %756 = vmatprep.subr.bf16.mxu0 %v662
        %757 = vmatpush1.bf16.msra.mxu0 %v661
        %758 = vmatprep.subr.bf16.mxu0 %v666
        %759 = vmatpush1.bf16.msra.mxu0 %v665
        %760 = vmatprep.subr.bf16.mxu0 %v670
        %761 = vmatpush1.bf16.msra.mxu0 %v669
        %762 = vmatprep.subr.bf16.mxu0 0
        %763 = vmatpush1.bf16.msra.mxu0 0
        %764 = vmatprep.subr.bf16.mxu0 0
        %765 = vmatpush1.bf16.msra.mxu0 0
        %766 = vmatprep.subr.bf16.mxu0 0
        %767 = vmatpush1.bf16.msra.mxu0 0
        %768 = vmatprep.subr.bf16.mxu0 0
        %769 = vmatpush1.bf16.msra.mxu0 0
        %770 = vmatprep.subr.bf16.mxu0 0
        %771 = vmatpush1.bf16.msra.mxu0 0
        %772 = vmatprep.subr.bf16.mxu0 0
        %773 = vmatpush1.bf16.msra.mxu0 0
        %774 = vmatprep.subr.bf16.mxu0 0
        %775 = vmatpush1.bf16.msra.mxu0 0
        %776 = vmatprep.subr.bf16.mxu0 0
        %777 = vmatpush1.bf16.msra.mxu0 0
        %778 = vmatprep.mubr.bf16.mxu0 0
        %779 = vmatmul.mubr.bf16.gmra.mrb[0].mxu0 %v541
        %v780 = vpop.f32.mrb[0].mxu0
        %v781 = vadd.f32 %v528, %v780
        %v782 = vpop.f32.mrb[0].mxu0
        %v783 = vadd.f32 %v532, %v782
        %v784 = vpop.f32.mrb[0].mxu0
        %v785 = vadd.f32 %v528, %v784
        %v786 = vpop.f32.mrb[0].mxu0
        %v787 = vadd.f32 %v532, %v786
        %788 = vdwg.mxu0
        %v789 = vmax.f32 %v738, 0.0
        %v790 = vmax.f32 %v740, 0.0
        %v791 = vmax.f32 %v781, 0.0
        %v792 = vmax.f32 %v783, 0.0
        %v793 = vmax.f32 %v742, 0.0
        %v794 = vmax.f32 %v744, 0.0
        %v795 = vmax.f32 %v785, 0.0
        %v796 = vmax.f32 %v787, 0.0
        %v797 = vpack.c.bf16 %v793, %v789
        %v798 = vpack.c.bf16 %v794, %v790
        %v799 = vpack.c.bf16 %v795, %v791
        %v800 = vpack.c.bf16 %v796, %v792
        %v801 = vld [vmem:[#allocation7] sm:$0xff]
        %v802 = vld [vmem:[#allocation7 + $0x8] sm:$0xff]
        %v803 = vld [vmem:[#allocation7 + $0x10] sm:$0xff]
        %v804 = vld [vmem:[#allocation7 + $0x18] sm:$0xff]
        %v805 = vld [vmem:[#allocation7 + $0x20] sm:$0xff]
        %v806 = vld [vmem:[#allocation7 + $0x28] sm:$0xff]
        %v807 = vld [vmem:[#allocation7 + $0x30] sm:$0xff]
        %v808 = vld [vmem:[#allocation7 + $0x38] sm:$0xff]
        %v809 = vld [vmem:[#allocation7 + $0x40] sm:$0xff]
        %v810 = vld [vmem:[#allocation7 + $0x48] sm:$0xff]
        %v811 = vld [vmem:[#allocation7 + $0x50] sm:$0xff]
        %v812 = vld [vmem:[#allocation7 + $0x58] sm:$0xff]
        %v813 = vld [vmem:[#allocation7 + $0x60] sm:$0xff]
        %v814 = vld [vmem:[#allocation7 + $0x68] sm:$0xff]
        %v815 = vld [vmem:[#allocation7 + $0x70] sm:$0xff]
        %v816 = vld [vmem:[#allocation7 + $0x78] sm:$0xff]
        %v817 = vld [vmem:[#allocation7 + $0x80] sm:$0xff]
        %v818 = vld [vmem:[#allocation7 + $0x88] sm:$0xff]
        %v819 = vld [vmem:[#allocation7 + $0x90] sm:$0xff]
        %v820 = vld [vmem:[#allocation7 + $0x98] sm:$0xff]
        %v821 = vld [vmem:[#allocation7 + $0xa0] sm:$0xff]
        %v822 = vld [vmem:[#allocation7 + $0xa8] sm:$0xff]
        %v823 = vld [vmem:[#allocation7 + $0xb0] sm:$0xff]
        %v824 = vld [vmem:[#allocation7 + $0xb8] sm:$0xff]
        %v825 = vld [vmem:[#allocation7 + $0xc0] sm:$0xff]
        %v826 = vld [vmem:[#allocation7 + $0xc8] sm:$0xff]
        %v827 = vld [vmem:[#allocation7 + $0xd0] sm:$0xff]
        %v828 = vld [vmem:[#allocation7 + $0xd8] sm:$0xff]
        %v829 = vld [vmem:[#allocation7 + $0xe0] sm:$0xff]
        %v830 = vld [vmem:[#allocation7 + $0xe8] sm:$0xff]
        %v831 = vld [vmem:[#allocation7 + $0xf0] sm:$0xff]
        %v832 = vld [vmem:[#allocation7 + $0xf8] sm:$0xff]
        %v833 = vld [vmem:[#allocation7 + $0x100] sm:$0xff]
        %v834 = vld [vmem:[#allocation7 + $0x108] sm:$0xff]
        %v835 = vld [vmem:[#allocation7 + $0x110] sm:$0xff]
        %v836 = vld [vmem:[#allocation7 + $0x118] sm:$0xff]
        %v837 = vld [vmem:[#allocation7 + $0x120] sm:$0xff]
        %v838 = vld [vmem:[#allocation7 + $0x128] sm:$0xff]
        %v839 = vld [vmem:[#allocation7 + $0x130] sm:$0xff]
        %v840 = vld [vmem:[#allocation7 + $0x138] sm:$0xff]
        %v841 = vld [vmem:[#allocation7 + $0x140] sm:$0xff]
        %v842 = vld [vmem:[#allocation7 + $0x148] sm:$0xff]
        %v843 = vld [vmem:[#allocation7 + $0x150] sm:$0xff]
        %v844 = vld [vmem:[#allocation7 + $0x158] sm:$0xff]
        %v845 = vld [vmem:[#allocation7 + $0x160] sm:$0xff]
        %v846 = vld [vmem:[#allocation7 + $0x168] sm:$0xff]
        %v847 = vld [vmem:[#allocation7 + $0x170] sm:$0xff]
        %v848 = vld [vmem:[#allocation7 + $0x178] sm:$0xff]
        %v849 = vld [vmem:[#allocation7 + $0x180] sm:$0xff]
        %v850 = vld [vmem:[#allocation7 + $0x188] sm:$0xff]
        %v851 = vld [vmem:[#allocation7 + $0x190] sm:$0xff]
        %v852 = vld [vmem:[#allocation7 + $0x198] sm:$0xff]
        %v853 = vld [vmem:[#allocation7 + $0x1a0] sm:$0xff]
        %v854 = vld [vmem:[#allocation7 + $0x1a8] sm:$0xff]
        %v855 = vld [vmem:[#allocation7 + $0x1b0] sm:$0xff]
        %v856 = vld [vmem:[#allocation7 + $0x1b8] sm:$0xff]
        %v857 = vld [vmem:[#allocation7 + $0x1c0] sm:$0xff]
        %v858 = vld [vmem:[#allocation7 + $0x1c8] sm:$0xff]
        %v859 = vld [vmem:[#allocation7 + $0x1d0] sm:$0xff]
        %v860 = vld [vmem:[#allocation7 + $0x1d8] sm:$0xff]
        %v861 = vld [vmem:[#allocation7 + $0x1e0] sm:$0xff]
        %v862 = vld [vmem:[#allocation7 + $0x1e8] sm:$0xff]
        %v863 = vld [vmem:[#allocation7 + $0x1f0] sm:$0xff]
        %v864 = vld [vmem:[#allocation7 + $0x1f8] sm:$0xff]
        %v865 = vld [vmem:[%s4] sm:$0x3]
        %v867 = vlaneseq
        %v868 = vshrl.u32 %v867, 7
        %v869 = vsub.s32 0, %v868
        %v870 = vrot.slane %v865, %v869
        %v871 = vlaneseq
        %v872 = vshrl.u32 %v871, 7
        %v873 = vsub.s32 1, %v872
        %v874 = vrot.slane %v865, %v873
        %v941 = vunpack.c.l.b16 %v801
        %v942 = vunpack.c.h.b16 %v801
        %v943 = vunpack.c.l.b16 %v802
        %v944 = vunpack.c.h.b16 %v802
        %v945 = vunpack.c.l.b16 %v803
        %v946 = vunpack.c.h.b16 %v803
        %v947 = vunpack.c.l.b16 %v804
        %v948 = vunpack.c.h.b16 %v804
        %v949 = vunpack.c.l.b16 %v805
        %v950 = vunpack.c.h.b16 %v805
        %v951 = vunpack.c.l.b16 %v806
        %v952 = vunpack.c.h.b16 %v806
        %v953 = vunpack.c.l.b16 %v807
        %v954 = vunpack.c.h.b16 %v807
        %v955 = vunpack.c.l.b16 %v808
        %v956 = vunpack.c.h.b16 %v808
        %v957 = vunpack.c.l.b16 %v809
        %v958 = vunpack.c.h.b16 %v809
        %v959 = vunpack.c.l.b16 %v810
        %v960 = vunpack.c.h.b16 %v810
        %v961 = vunpack.c.l.b16 %v811
        %v962 = vunpack.c.h.b16 %v811
        %v963 = vunpack.c.l.b16 %v812
        %v964 = vunpack.c.h.b16 %v812
        %v965 = vunpack.c.l.b16 %v813
        %v966 = vunpack.c.h.b16 %v813
        %v967 = vunpack.c.l.b16 %v814
        %v968 = vunpack.c.h.b16 %v814
        %v969 = vunpack.c.l.b16 %v815
        %v970 = vunpack.c.h.b16 %v815
        %v971 = vunpack.c.l.b16 %v816
        %v972 = vunpack.c.h.b16 %v816
        %v973 = vunpack.c.l.b16 %v817
        %v974 = vunpack.c.h.b16 %v817
        %v975 = vunpack.c.l.b16 %v818
        %v976 = vunpack.c.h.b16 %v818
        %v977 = vunpack.c.l.b16 %v819
        %v978 = vunpack.c.h.b16 %v819
        %v979 = vunpack.c.l.b16 %v820
        %v980 = vunpack.c.h.b16 %v820
        %v981 = vunpack.c.l.b16 %v821
        %v982 = vunpack.c.h.b16 %v821
        %v983 = vunpack.c.l.b16 %v822
        %v984 = vunpack.c.h.b16 %v822
        %v985 = vunpack.c.l.b16 %v823
        %v986 = vunpack.c.h.b16 %v823
        %v987 = vunpack.c.l.b16 %v824
        %v988 = vunpack.c.h.b16 %v824
        %v989 = vunpack.c.l.b16 %v825
        %v990 = vunpack.c.h.b16 %v825
        %v991 = vunpack.c.l.b16 %v826
        %v992 = vunpack.c.h.b16 %v826
        %v993 = vunpack.c.l.b16 %v827
        %v994 = vunpack.c.h.b16 %v827
        %v995 = vunpack.c.l.b16 %v828
        %v996 = vunpack.c.h.b16 %v828
        %v997 = vunpack.c.l.b16 %v829
        %v998 = vunpack.c.h.b16 %v829
        %v999 = vunpack.c.l.b16 %v830
        %v1000 = vunpack.c.h.b16 %v830
        %v1001 = vunpack.c.l.b16 %v831
        %v1002 = vunpack.c.h.b16 %v831
        %v1003 = vunpack.c.l.b16 %v832
        %v1004 = vunpack.c.h.b16 %v832
        %v1005 = vunpack.c.l.b16 %v833
        %v1006 = vunpack.c.h.b16 %v833
        %v1007 = vunpack.c.l.b16 %v834
        %v1008 = vunpack.c.h.b16 %v834
        %v1009 = vunpack.c.l.b16 %v835
        %v1010 = vunpack.c.h.b16 %v835
        %v1011 = vunpack.c.l.b16 %v836
        %v1012 = vunpack.c.h.b16 %v836
        %v1013 = vunpack.c.l.b16 %v837
        %v1014 = vunpack.c.h.b16 %v837
        %v1015 = vunpack.c.l.b16 %v838
        %v1016 = vunpack.c.h.b16 %v838
        %v1017 = vunpack.c.l.b16 %v839
        %v1018 = vunpack.c.h.b16 %v839
        %v1019 = vunpack.c.l.b16 %v840
        %v1020 = vunpack.c.h.b16 %v840
        %v1021 = vunpack.c.l.b16 %v841
        %v1022 = vunpack.c.h.b16 %v841
        %v1023 = vunpack.c.l.b16 %v842
        %v1024 = vunpack.c.h.b16 %v842
        %v1025 = vunpack.c.l.b16 %v843
        %v1026 = vunpack.c.h.b16 %v843
        %v1027 = vunpack.c.l.b16 %v844
        %v1028 = vunpack.c.h.b16 %v844
        %v1029 = vunpack.c.l.b16 %v845
        %v1030 = vunpack.c.h.b16 %v845
        %v1031 = vunpack.c.l.b16 %v846
        %v1032 = vunpack.c.h.b16 %v846
        %v1033 = vunpack.c.l.b16 %v847
        %v1034 = vunpack.c.h.b16 %v847
        %v1035 = vunpack.c.l.b16 %v848
        %v1036 = vunpack.c.h.b16 %v848
        %v1037 = vunpack.c.l.b16 %v849
        %v1038 = vunpack.c.h.b16 %v849
        %v1039 = vunpack.c.l.b16 %v850
        %v1040 = vunpack.c.h.b16 %v850
        %v1041 = vunpack.c.l.b16 %v851
        %v1042 = vunpack.c.h.b16 %v851
        %v1043 = vunpack.c.l.b16 %v852
        %v1044 = vunpack.c.h.b16 %v852
        %v1045 = vunpack.c.l.b16 %v853
        %v1046 = vunpack.c.h.b16 %v853
        %v1047 = vunpack.c.l.b16 %v854
        %v1048 = vunpack.c.h.b16 %v854
        %v1049 = vunpack.c.l.b16 %v855
        %v1050 = vunpack.c.h.b16 %v855
        %v1051 = vunpack.c.l.b16 %v856
        %v1052 = vunpack.c.h.b16 %v856
        %v1053 = vunpack.c.l.b16 %v857
        %v1054 = vunpack.c.h.b16 %v857
        %v1055 = vunpack.c.l.b16 %v858
        %v1056 = vunpack.c.h.b16 %v858
        %v1057 = vunpack.c.l.b16 %v859
        %v1058 = vunpack.c.h.b16 %v859
        %v1059 = vunpack.c.l.b16 %v860
        %v1060 = vunpack.c.h.b16 %v860
        %v1061 = vunpack.c.l.b16 %v861
        %v1062 = vunpack.c.h.b16 %v861
        %v1063 = vunpack.c.l.b16 %v862
        %v1064 = vunpack.c.h.b16 %v862
        %v1065 = vunpack.c.l.b16 %v863
        %v1066 = vunpack.c.h.b16 %v863
        %v1067 = vunpack.c.l.b16 %v864
        %v1068 = vunpack.c.h.b16 %v864
        %v1069 = vpack.c.b16 %v943, %v941
        %v1070 = vpack.c.b16 %v944, %v942
        %v1071 = vpack.c.b16 %v947, %v945
        %v1072 = vpack.c.b16 %v948, %v946
        %v1073 = vpack.c.b16 %v951, %v949
        %v1074 = vpack.c.b16 %v952, %v950
        %v1075 = vpack.c.b16 %v955, %v953
        %v1076 = vpack.c.b16 %v956, %v954
        %v1077 = vpack.c.b16 %v959, %v957
        %v1078 = vpack.c.b16 %v960, %v958
        %v1079 = vpack.c.b16 %v963, %v961
        %v1080 = vpack.c.b16 %v964, %v962
        %v1081 = vpack.c.b16 %v967, %v965
        %v1082 = vpack.c.b16 %v968, %v966
        %v1083 = vpack.c.b16 %v971, %v969
        %v1084 = vpack.c.b16 %v972, %v970
        %v1085 = vpack.c.b16 %v975, %v973
        %v1086 = vpack.c.b16 %v976, %v974
        %v1087 = vpack.c.b16 %v979, %v977
        %v1088 = vpack.c.b16 %v980, %v978
        %v1089 = vpack.c.b16 %v983, %v981
        %v1090 = vpack.c.b16 %v984, %v982
        %v1091 = vpack.c.b16 %v987, %v985
        %v1092 = vpack.c.b16 %v988, %v986
        %v1093 = vpack.c.b16 %v991, %v989
        %v1094 = vpack.c.b16 %v992, %v990
        %v1095 = vpack.c.b16 %v995, %v993
        %v1096 = vpack.c.b16 %v996, %v994
        %v1097 = vpack.c.b16 %v999, %v997
        %v1098 = vpack.c.b16 %v1000, %v998
        %v1099 = vpack.c.b16 %v1003, %v1001
        %v1100 = vpack.c.b16 %v1004, %v1002
        %v1101 = vpack.c.b16 %v1007, %v1005
        %v1102 = vpack.c.b16 %v1008, %v1006
        %v1103 = vpack.c.b16 %v1011, %v1009
        %v1104 = vpack.c.b16 %v1012, %v1010
        %v1105 = vpack.c.b16 %v1015, %v1013
        %v1106 = vpack.c.b16 %v1016, %v1014
        %v1107 = vpack.c.b16 %v1019, %v1017
        %v1108 = vpack.c.b16 %v1020, %v1018
        %v1109 = vpack.c.b16 %v1023, %v1021
        %v1110 = vpack.c.b16 %v1024, %v1022
        %v1111 = vpack.c.b16 %v1027, %v1025
        %v1112 = vpack.c.b16 %v1028, %v1026
        %v1113 = vpack.c.b16 %v1031, %v1029
        %v1114 = vpack.c.b16 %v1032, %v1030
        %v1115 = vpack.c.b16 %v1035, %v1033
        %v1116 = vpack.c.b16 %v1036, %v1034
        %v1117 = vpack.c.b16 %v1039, %v1037
        %v1118 = vpack.c.b16 %v1040, %v1038
        %v1119 = vpack.c.b16 %v1043, %v1041
        %v1120 = vpack.c.b16 %v1044, %v1042
        %v1121 = vpack.c.b16 %v1047, %v1045
        %v1122 = vpack.c.b16 %v1048, %v1046
        %v1123 = vpack.c.b16 %v1051, %v1049
        %v1124 = vpack.c.b16 %v1052, %v1050
        %v1125 = vpack.c.b16 %v1055, %v1053
        %v1126 = vpack.c.b16 %v1056, %v1054
        %v1127 = vpack.c.b16 %v1059, %v1057
        %v1128 = vpack.c.b16 %v1060, %v1058
        %v1129 = vpack.c.b16 %v1063, %v1061
        %v1130 = vpack.c.b16 %v1064, %v1062
        %v1131 = vpack.c.b16 %v1067, %v1065
        %v1132 = vpack.c.b16 %v1068, %v1066
        %1197 = vmatprep.subr.bf16.mxu0 %v1070
        %1198 = vmatpush1.bf16.msra.mxu0 %v1069
        %1199 = vmatprep.subr.bf16.mxu0 %v1072
        %1200 = vmatpush1.bf16.msra.mxu0 %v1071
        %1201 = vmatprep.subr.bf16.mxu0 %v1074
        %1202 = vmatpush1.bf16.msra.mxu0 %v1073
        %1203 = vmatprep.subr.bf16.mxu0 %v1076
        %1204 = vmatpush1.bf16.msra.mxu0 %v1075
        %1205 = vmatprep.subr.bf16.mxu0 %v1078
        %1206 = vmatpush1.bf16.msra.mxu0 %v1077
        %1207 = vmatprep.subr.bf16.mxu0 %v1080
        %1208 = vmatpush1.bf16.msra.mxu0 %v1079
        %1209 = vmatprep.subr.bf16.mxu0 %v1082
        %1210 = vmatpush1.bf16.msra.mxu0 %v1081
        %1211 = vmatprep.subr.bf16.mxu0 %v1084
        %1212 = vmatpush1.bf16.msra.mxu0 %v1083
        %1213 = vmatprep.subr.bf16.mxu0 %v1086
        %1214 = vmatpush1.bf16.msra.mxu0 %v1085
        %1215 = vmatprep.subr.bf16.mxu0 %v1088
        %1216 = vmatpush1.bf16.msra.mxu0 %v1087
        %1217 = vmatprep.subr.bf16.mxu0 %v1090
        %1218 = vmatpush1.bf16.msra.mxu0 %v1089
        %1219 = vmatprep.subr.bf16.mxu0 %v1092
        %1220 = vmatpush1.bf16.msra.mxu0 %v1091
        %1221 = vmatprep.subr.bf16.mxu0 %v1094
        %1222 = vmatpush1.bf16.msra.mxu0 %v1093
        %1223 = vmatprep.subr.bf16.mxu0 %v1096
        %1224 = vmatpush1.bf16.msra.mxu0 %v1095
        %1225 = vmatprep.subr.bf16.mxu0 %v1098
        %1226 = vmatpush1.bf16.msra.mxu0 %v1097
        %1227 = vmatprep.subr.bf16.mxu0 %v1100
        %1228 = vmatpush1.bf16.msra.mxu0 %v1099
        %1229 = vmatprep.mubr.bf16.mxu0 %v798
        %1230 = vmatmul.mubr.bf16.gmra.mrb[0].mxu0 %v797
        %v1231 = vpop.f32.mrb[0].mxu0
        %v1232 = vadd.f32 %v870, %v1231
        %v1233 = vpop.f32.mrb[0].mxu0
        %v1234 = vadd.f32 %v874, %v1233
        %v1235 = vpop.f32.mrb[0].mxu0
        %v1236 = vadd.f32 %v870, %v1235
        %v1237 = vpop.f32.mrb[0].mxu0
        %v1238 = vadd.f32 %v874, %v1237
        %1239 = vdwg.mxu0
        %1240 = vmatprep.subr.bf16.mxu0 %v1102
        %1241 = vmatpush1.bf16.msra.mxu0 %v1101
        %1242 = vmatprep.subr.bf16.mxu0 %v1104
        %1243 = vmatpush1.bf16.msra.mxu0 %v1103
        %1244 = vmatprep.subr.bf16.mxu0 %v1106
        %1245 = vmatpush1.bf16.msra.mxu0 %v1105
        %1246 = vmatprep.subr.bf16.mxu0 %v1108
        %1247 = vmatpush1.bf16.msra.mxu0 %v1107
        %1248 = vmatprep.subr.bf16.mxu0 %v1110
        %1249 = vmatpush1.bf16.msra.mxu0 %v1109
        %1250 = vmatprep.subr.bf16.mxu0 %v1112
        %1251 = vmatpush1.bf16.msra.mxu0 %v1111
        %1252 = vmatprep.subr.bf16.mxu0 %v1114
        %1253 = vmatpush1.bf16.msra.mxu0 %v1113
        %1254 = vmatprep.subr.bf16.mxu0 %v1116
        %1255 = vmatpush1.bf16.msra.mxu0 %v1115
        %1256 = vmatprep.subr.bf16.mxu0 %v1118
        %1257 = vmatpush1.bf16.msra.mxu0 %v1117
        %1258 = vmatprep.subr.bf16.mxu0 %v1120
        %1259 = vmatpush1.bf16.msra.mxu0 %v1119
        %1260 = vmatprep.subr.bf16.mxu0 %v1122
        %1261 = vmatpush1.bf16.msra.mxu0 %v1121
        %1262 = vmatprep.subr.bf16.mxu0 %v1124
        %1263 = vmatpush1.bf16.msra.mxu0 %v1123
        %1264 = vmatprep.subr.bf16.mxu0 %v1126
        %1265 = vmatpush1.bf16.msra.mxu0 %v1125
        %1266 = vmatprep.subr.bf16.mxu0 %v1128
        %1267 = vmatpush1.bf16.msra.mxu0 %v1127
        %1268 = vmatprep.subr.bf16.mxu0 %v1130
        %1269 = vmatpush1.bf16.msra.mxu0 %v1129
        %1270 = vmatprep.subr.bf16.mxu0 %v1132
        %1271 = vmatpush1.bf16.msra.mxu0 %v1131
        %1272 = vmatprep.mubr.bf16.mxu0 %v800
        %1273 = vmatmul.mubr.bf16.gmra.mrb[0].mxu0 %v799
        %v1274 = vpop.f32.mrb[0].mxu0
        %v1275 = vadd.f32 %v1232, %v1274
        %v1276 = vpop.f32.mrb[0].mxu0
        %v1277 = vadd.f32 %v1234, %v1276
        %v1278 = vpop.f32.mrb[0].mxu0
        %v1279 = vadd.f32 %v1236, %v1278
        %v1280 = vpop.f32.mrb[0].mxu0
        %v1281 = vadd.f32 %v1238, %v1280
        %1282 = vdwg.mxu0
        %v1283 = vmax.f32 %v1275, 0.0
        %v1284 = vmax.f32 %v1277, 0.0
        %v1285 = vmax.f32 %v1279, 0.0
        %v1286 = vmax.f32 %v1281, 0.0
        %v1287 = vpack.c.bf16 %v1285, %v1283
        %v1288 = vpack.c.bf16 %v1286, %v1284
        %v1289 = vld [vmem:[#allocation8] sm:$0xf]
        %v1290 = vld [vmem:[#allocation8 + $0x4] sm:$0xf]
        %v1291 = vld [vmem:[#allocation8 + $0x8] sm:$0xf]
        %v1292 = vld [vmem:[#allocation8 + $0xc] sm:$0xf]
        %v1293 = vld [vmem:[#allocation8 + $0x10] sm:$0xf]
        %v1294 = vld [vmem:[#allocation8 + $0x14] sm:$0xf]
        %v1295 = vld [vmem:[#allocation8 + $0x18] sm:$0xf]
        %v1296 = vld [vmem:[#allocation8 + $0x1c] sm:$0xf]
        %v1297 = vld [vmem:[#allocation8 + $0x20] sm:$0xf]
        %v1298 = vld [vmem:[#allocation8 + $0x24] sm:$0xf]
        %v1299 = vld [vmem:[#allocation8 + $0x28] sm:$0xf]
        %v1300 = vld [vmem:[#allocation8 + $0x2c] sm:$0xf]
        %v1301 = vld [vmem:[#allocation8 + $0x30] sm:$0xf]
        %v1302 = vld [vmem:[#allocation8 + $0x34] sm:$0xf]
        %v1303 = vld [vmem:[#allocation8 + $0x38] sm:$0xf]
        %v1304 = vld [vmem:[#allocation8 + $0x3c] sm:$0xf]
        %v1305 = vld [vmem:[#allocation8 + $0x40] sm:$0xf]
        %v1306 = vld [vmem:[#allocation8 + $0x44] sm:$0xf]
        %v1307 = vld [vmem:[#allocation8 + $0x48] sm:$0xf]
        %v1308 = vld [vmem:[#allocation8 + $0x4c] sm:$0xf]
        %v1309 = vld [vmem:[#allocation8 + $0x50] sm:$0xf]
        %v1310 = vld [vmem:[#allocation8 + $0x54] sm:$0xf]
        %v1311 = vld [vmem:[#allocation8 + $0x58] sm:$0xf]
        %v1312 = vld [vmem:[#allocation8 + $0x5c] sm:$0xf]
        %v1313 = vld [vmem:[#allocation8 + $0x60] sm:$0xf]
        %v1314 = vld [vmem:[#allocation8 + $0x64] sm:$0xf]
        %v1315 = vld [vmem:[#allocation8 + $0x68] sm:$0xf]
        %v1316 = vld [vmem:[#allocation8 + $0x6c] sm:$0xf]
        %v1317 = vld [vmem:[#allocation8 + $0x70] sm:$0xf]
        %v1318 = vld [vmem:[#allocation8 + $0x74] sm:$0xf]
        %v1319 = vld [vmem:[#allocation8 + $0x78] sm:$0xf]
        %v1320 = vld [vmem:[#allocation8 + $0x7c] sm:$0xf]
        %v1321 = vld [vmem:[%s6] sm:$0x1]
        %v1323 = vlaneseq
        %v1324 = vshrl.u32 %v1323, 7
        %v1325 = vsub.s32 0, %v1324
        %v1326 = vrot.slane %v1321, %v1325
        %v1360 = vunpack.c.l.b16 %v1289
        %v1361 = vunpack.c.l.b16 %v1290
        %v1362 = vunpack.c.l.b16 %v1291
        %v1363 = vunpack.c.l.b16 %v1292
        %v1364 = vunpack.c.l.b16 %v1293
        %v1365 = vunpack.c.l.b16 %v1294
        %v1366 = vunpack.c.l.b16 %v1295
        %v1367 = vunpack.c.l.b16 %v1296
        %v1368 = vunpack.c.l.b16 %v1297
        %v1369 = vunpack.c.l.b16 %v1298
        %v1370 = vunpack.c.l.b16 %v1299
        %v1371 = vunpack.c.l.b16 %v1300
        %v1372 = vunpack.c.l.b16 %v1301
        %v1373 = vunpack.c.l.b16 %v1302
        %v1374 = vunpack.c.l.b16 %v1303
        %v1375 = vunpack.c.l.b16 %v1304
        %v1376 = vunpack.c.l.b16 %v1305
        %v1377 = vunpack.c.l.b16 %v1306
        %v1378 = vunpack.c.l.b16 %v1307
        %v1379 = vunpack.c.l.b16 %v1308
        %v1380 = vunpack.c.l.b16 %v1309
        %v1381 = vunpack.c.l.b16 %v1310
        %v1382 = vunpack.c.l.b16 %v1311
        %v1383 = vunpack.c.l.b16 %v1312
        %v1384 = vunpack.c.l.b16 %v1313
        %v1385 = vunpack.c.l.b16 %v1314
        %v1386 = vunpack.c.l.b16 %v1315
        %v1387 = vunpack.c.l.b16 %v1316
        %v1388 = vunpack.c.l.b16 %v1317
        %v1389 = vunpack.c.l.b16 %v1318
        %v1390 = vunpack.c.l.b16 %v1319
        %v1391 = vunpack.c.l.b16 %v1320
        %v1392 = vpack.c.b16 %v1361, %v1360
        %v1393 = vpack.c.b16 %v1363, %v1362
        %v1394 = vpack.c.b16 %v1365, %v1364
        %v1395 = vpack.c.b16 %v1367, %v1366
        %v1396 = vpack.c.b16 %v1369, %v1368
        %v1397 = vpack.c.b16 %v1371, %v1370
        %v1398 = vpack.c.b16 %v1373, %v1372
        %v1399 = vpack.c.b16 %v1375, %v1374
        %v1400 = vpack.c.b16 %v1377, %v1376
        %v1401 = vpack.c.b16 %v1379, %v1378
        %v1402 = vpack.c.b16 %v1381, %v1380
        %v1403 = vpack.c.b16 %v1383, %v1382
        %v1404 = vpack.c.b16 %v1385, %v1384
        %v1405 = vpack.c.b16 %v1387, %v1386
        %v1406 = vpack.c.b16 %v1389, %v1388
        %v1407 = vpack.c.b16 %v1391, %v1390
        %1424 = vmatprep.subr.bf16.mxu0 0
        %1425 = vmatpush1.bf16.msra.mxu0 %v1392
        %1426 = vmatprep.subr.bf16.mxu0 0
        %1427 = vmatpush1.bf16.msra.mxu0 %v1393
        %1428 = vmatprep.subr.bf16.mxu0 0
        %1429 = vmatpush1.bf16.msra.mxu0 %v1394
        %1430 = vmatprep.subr.bf16.mxu0 0
        %1431 = vmatpush1.bf16.msra.mxu0 %v1395
        %1432 = vmatprep.subr.bf16.mxu0 0
        %1433 = vmatpush1.bf16.msra.mxu0 %v1396
        %1434 = vmatprep.subr.bf16.mxu0 0
        %1435 = vmatpush1.bf16.msra.mxu0 %v1397
        %1436 = vmatprep.subr.bf16.mxu0 0
        %1437 = vmatpush1.bf16.msra.mxu0 %v1398
        %1438 = vmatprep.subr.bf16.mxu0 0
        %1439 = vmatpush1.bf16.msra.mxu0 %v1399
        %1440 = vmatprep.subr.bf16.mxu0 0
        %1441 = vmatpush1.bf16.msra.mxu0 %v1400
        %1442 = vmatprep.subr.bf16.mxu0 0
        %1443 = vmatpush1.bf16.msra.mxu0 %v1401
        %1444 = vmatprep.subr.bf16.mxu0 0
        %1445 = vmatpush1.bf16.msra.mxu0 %v1402
        %1446 = vmatprep.subr.bf16.mxu0 0
        %1447 = vmatpush1.bf16.msra.mxu0 %v1403
        %1448 = vmatprep.subr.bf16.mxu0 0
        %1449 = vmatpush1.bf16.msra.mxu0 %v1404
        %1450 = vmatprep.subr.bf16.mxu0 0
        %1451 = vmatpush1.bf16.msra.mxu0 %v1405
        %1452 = vmatprep.subr.bf16.mxu0 0
        %1453 = vmatpush1.bf16.msra.mxu0 %v1406
        %1454 = vmatprep.subr.bf16.mxu0 0
        %1455 = vmatpush1.bf16.msra.mxu0 %v1407
        %1456 = vmatprep.mubr.bf16.mxu0 %v1288
        %1457 = vmatmul.mubr.bf16.gmra.mrb[0].mxu0 %v1287
        %v1458 = vpop.f32.mrb[0].mxu0
        %v1459 = vadd.f32 %v1326, %v1458
        %v1460 = vpop.f32.mrb[0].mxu0
        %v1461 = vpop.f32.mrb[0].mxu0
        %v1462 = vadd.f32 %v1326, %v1461
        %v1463 = vpop.f32.mrb[0].mxu0
        %1464 = vdwg.mxu0
        %v1465 = vmax.f32 %v1459, 0.0
        %v1466 = vmax.f32 %v1462, 0.0
        %v1467 = vpack.c.bf16 %v1466, %v1465
        %v1468 = vld [vmem:[#allocation10] sm:$0xf]
        %v1469 = vld [vmem:[#allocation10 + $0x4] sm:$0xf]
        %v1470 = vld [vmem:[#allocation10 + $0x8] sm:$0xf]
        %v1471 = vld [vmem:[#allocation10 + $0xc] sm:$0xf]
        %v1472 = vld [vmem:[#allocation10 + $0x10] sm:$0xf]
        %v1473 = vld [vmem:[#allocation10 + $0x14] sm:$0xf]
        %v1474 = vld [vmem:[#allocation10 + $0x18] sm:$0xf]
        %v1475 = vld [vmem:[#allocation10 + $0x1c] sm:$0xf]
        %v1476 = vld [vmem:[#allocation10 + $0x20] sm:$0xf]
        %v1477 = vld [vmem:[#allocation10 + $0x24] sm:$0xf]
        %v1478 = vld [vmem:[#allocation10 + $0x28] sm:$0xf]
        %v1479 = vld [vmem:[#allocation10 + $0x2c] sm:$0xf]
        %v1480 = vld [vmem:[#allocation10 + $0x30] sm:$0xf]
        %v1481 = vld [vmem:[#allocation10 + $0x34] sm:$0xf]
        %v1482 = vld [vmem:[#allocation10 + $0x38] sm:$0xf]
        %v1483 = vld [vmem:[#allocation10 + $0x3c] sm:$0xf]
        %v1484 = vld [vmem:[%s8] sm:$0x1]
        %v1486 = vlaneseq
        %v1487 = vshrl.u32 %v1486, 7
        %v1488 = vsub.s32 0, %v1487
        %v1489 = vrot.slane %v1484, %v1488
        %v1507 = vunpack.c.l.b16 %v1468
        %v1508 = vunpack.c.l.b16 %v1469
        %v1509 = vunpack.c.l.b16 %v1470
        %v1510 = vunpack.c.l.b16 %v1471
        %v1511 = vunpack.c.l.b16 %v1472
        %v1512 = vunpack.c.l.b16 %v1473
        %v1513 = vunpack.c.l.b16 %v1474
        %v1514 = vunpack.c.l.b16 %v1475
        %v1515 = vunpack.c.l.b16 %v1476
        %v1516 = vunpack.c.l.b16 %v1477
        %v1517 = vunpack.c.l.b16 %v1478
        %v1518 = vunpack.c.l.b16 %v1479
        %v1519 = vunpack.c.l.b16 %v1480
        %v1520 = vunpack.c.l.b16 %v1481
        %v1521 = vunpack.c.l.b16 %v1482
        %v1522 = vunpack.c.l.b16 %v1483
        %v1523 = vpack.c.b16 %v1508, %v1507
        %v1524 = vpack.c.b16 %v1510, %v1509
        %v1525 = vpack.c.b16 %v1512, %v1511
        %v1526 = vpack.c.b16 %v1514, %v1513
        %v1527 = vpack.c.b16 %v1516, %v1515
        %v1528 = vpack.c.b16 %v1518, %v1517
        %v1529 = vpack.c.b16 %v1520, %v1519
        %v1530 = vpack.c.b16 %v1522, %v1521
        %1539 = vmatprep.subr.bf16.mxu0 0
        %1540 = vmatpush1.bf16.msra.mxu0 %v1523
        %1541 = vmatprep.subr.bf16.mxu0 0
        %1542 = vmatpush1.bf16.msra.mxu0 %v1524
        %1543 = vmatprep.subr.bf16.mxu0 0
        %1544 = vmatpush1.bf16.msra.mxu0 %v1525
        %1545 = vmatprep.subr.bf16.mxu0 0
        %1546 = vmatpush1.bf16.msra.mxu0 %v1526
        %1547 = vmatprep.subr.bf16.mxu0 0
        %1548 = vmatpush1.bf16.msra.mxu0 %v1527
        %1549 = vmatprep.subr.bf16.mxu0 0
        %1550 = vmatpush1.bf16.msra.mxu0 %v1528
        %1551 = vmatprep.subr.bf16.mxu0 0
        %1552 = vmatpush1.bf16.msra.mxu0 %v1529
        %1553 = vmatprep.subr.bf16.mxu0 0
        %1554 = vmatpush1.bf16.msra.mxu0 %v1530
        %1555 = vmatprep.subr.bf16.mxu0 0
        %1556 = vmatpush1.bf16.msra.mxu0 0
        %1557 = vmatprep.subr.bf16.mxu0 0
        %1558 = vmatpush1.bf16.msra.mxu0 0
        %1559 = vmatprep.subr.bf16.mxu0 0
        %1560 = vmatpush1.bf16.msra.mxu0 0
        %1561 = vmatprep.subr.bf16.mxu0 0
        %1562 = vmatpush1.bf16.msra.mxu0 0
        %1563 = vmatprep.subr.bf16.mxu0 0
        %1564 = vmatpush1.bf16.msra.mxu0 0
        %1565 = vmatprep.subr.bf16.mxu0 0
        %1566 = vmatpush1.bf16.msra.mxu0 0
        %1567 = vmatprep.subr.bf16.mxu0 0
        %1568 = vmatpush1.bf16.msra.mxu0 0
        %1569 = vmatprep.subr.bf16.mxu0 0
        %1570 = vmatpush1.bf16.msra.mxu0 0
        %1571 = vmatprep.mubr.bf16.mxu0 0
        %1572 = vmatmul.mubr.bf16.gmra.mrb[0].mxu0 %v1467
        %v1573 = vpop.f32.mrb[0].mxu0
        %v1574 = vadd.f32 %v1489, %v1573
        %v1575 = vpop.f32.mrb[0].mxu0
        %v1576 = vpop.f32.mrb[0].mxu0
        %v1577 = vadd.f32 %v1489, %v1576
        %v1578 = vpop.f32.mrb[0].mxu0
        %1579 = vdwg.mxu0
        %v1580 = vmax.f32 %v1574, 0.0
        %v1581 = vmax.f32 %v1577, 0.0
        %v1582 = vpack.c.bf16 %v1581, %v1580
        %v1583 = vld [vmem:[#allocation11] sm:$0xf]
        %v1584 = vld [vmem:[#allocation11 + $0x4] sm:$0xf]
        %v1585 = vld [vmem:[#allocation11 + $0x8] sm:$0xf]
        %v1586 = vld [vmem:[#allocation11 + $0xc] sm:$0xf]
        %v1587 = vld [vmem:[#allocation11 + $0x10] sm:$0xf]
        %v1588 = vld [vmem:[#allocation11 + $0x14] sm:$0xf]
        %v1589 = vld [vmem:[#allocation11 + $0x18] sm:$0xf]
        %v1590 = vld [vmem:[#allocation11 + $0x1c] sm:$0xf]
        %v1591 = vld [vmem:[#allocation11 + $0x20] sm:$0xf]
        %v1592 = vld [vmem:[#allocation11 + $0x24] sm:$0xf]
        %v1593 = vld [vmem:[#allocation11 + $0x28] sm:$0xf]
        %v1594 = vld [vmem:[#allocation11 + $0x2c] sm:$0xf]
        %v1595 = vld [vmem:[#allocation11 + $0x30] sm:$0xf]
        %v1596 = vld [vmem:[#allocation11 + $0x34] sm:$0xf]
        %v1597 = vld [vmem:[#allocation11 + $0x38] sm:$0xf]
        %v1598 = vld [vmem:[#allocation11 + $0x3c] sm:$0xf]
        %v1599 = vld [vmem:[%s10] sm:$0x1]
        %v1601 = vlaneseq
        %v1602 = vshrl.u32 %v1601, 7
        %v1603 = vsub.s32 0, %v1602
        %v1604 = vrot.slane %v1599, %v1603
        %v1622 = vunpack.c.l.b16 %v1583
        %v1623 = vunpack.c.l.b16 %v1584
        %v1624 = vunpack.c.l.b16 %v1585
        %v1625 = vunpack.c.l.b16 %v1586
        %v1626 = vunpack.c.l.b16 %v1587
        %v1627 = vunpack.c.l.b16 %v1588
        %v1628 = vunpack.c.l.b16 %v1589
        %v1629 = vunpack.c.l.b16 %v1590
        %v1630 = vunpack.c.l.b16 %v1591
        %v1631 = vunpack.c.l.b16 %v1592
        %v1632 = vunpack.c.l.b16 %v1593
        %v1633 = vunpack.c.l.b16 %v1594
        %v1634 = vunpack.c.l.b16 %v1595
        %v1635 = vunpack.c.l.b16 %v1596
        %v1636 = vunpack.c.l.b16 %v1597
        %v1637 = vunpack.c.l.b16 %v1598
        %v1638 = vpack.c.b16 %v1623, %v1622
        %v1639 = vpack.c.b16 %v1625, %v1624
        %v1640 = vpack.c.b16 %v1627, %v1626
        %v1641 = vpack.c.b16 %v1629, %v1628
        %v1642 = vpack.c.b16 %v1631, %v1630
        %v1643 = vpack.c.b16 %v1633, %v1632
        %v1644 = vpack.c.b16 %v1635, %v1634
        %v1645 = vpack.c.b16 %v1637, %v1636
        %1654 = vmatprep.subr.bf16.mxu0 0
        %1655 = vmatpush1.bf16.msra.mxu0 %v1638
        %1656 = vmatprep.subr.bf16.mxu0 0
        %1657 = vmatpush1.bf16.msra.mxu0 %v1639
        %1658 = vmatprep.subr.bf16.mxu0 0
        %1659 = vmatpush1.bf16.msra.mxu0 %v1640
        %1660 = vmatprep.subr.bf16.mxu0 0
        %1661 = vmatpush1.bf16.msra.mxu0 %v1641
        %1662 = vmatprep.subr.bf16.mxu0 0
        %1663 = vmatpush1.bf16.msra.mxu0 %v1642
        %1664 = vmatprep.subr.bf16.mxu0 0
        %1665 = vmatpush1.bf16.msra.mxu0 %v1643
        %1666 = vmatprep.subr.bf16.mxu0 0
        %1667 = vmatpush1.bf16.msra.mxu0 %v1644
        %1668 = vmatprep.subr.bf16.mxu0 0
        %1669 = vmatpush1.bf16.msra.mxu0 %v1645
        %1670 = vmatprep.subr.bf16.mxu0 0
        %1671 = vmatpush1.bf16.msra.mxu0 0
        %1672 = vmatprep.subr.bf16.mxu0 0
        %1673 = vmatpush1.bf16.msra.mxu0 0
        %1674 = vmatprep.subr.bf16.mxu0 0
        %1675 = vmatpush1.bf16.msra.mxu0 0
        %1676 = vmatprep.subr.bf16.mxu0 0
        %1677 = vmatpush1.bf16.msra.mxu0 0
        %1678 = vmatprep.subr.bf16.mxu0 0
        %1679 = vmatpush1.bf16.msra.mxu0 0
        %1680 = vmatprep.subr.bf16.mxu0 0
        %1681 = vmatpush1.bf16.msra.mxu0 0
        %1682 = vmatprep.subr.bf16.mxu0 0
        %1683 = vmatpush1.bf16.msra.mxu0 0
        %1684 = vmatprep.subr.bf16.mxu0 0
        %1685 = vmatpush1.bf16.msra.mxu0 0
        %1686 = vmatprep.mubr.bf16.mxu0 0
        %1687 = vmatmul.mubr.bf16.gmra.mrb[0].mxu0 %v1582
        %v1688 = vpop.f32.mrb[0].mxu0
        %v1689 = vadd.f32 %v1604, %v1688
        %v1690 = vpop.f32.mrb[0].mxu0
        %v1691 = vpop.f32.mrb[0].mxu0
        %v1692 = vadd.f32 %v1604, %v1691
        %v1693 = vpop.f32.mrb[0].mxu0
        %1694 = vdwg.mxu0
        %1695 = vmax.xlane.f32.xlu0 %v1689
        %v1696 = vpop.xlane.xlu0 %1695
        %1697 = vmax.xlane.f32.xlu0 %v1692
        %v1698 = vpop.xlane.xlu0 %1697
        %v1699 = vsub.f32 %v1689, %v1696
        %v1700 = vsub.f32 %v1692, %v1698
        %v1701 = vmul.f32 %v1699, 1.442695
        %v1702 = vpow.pop %v1701
        %v1703 = vmul.f32 %v1700, 1.442695
        %v1704 = vpow.pop %v1703
        %1705 = vadd.xlane.f32.xlu0 %v1702
        %v1706 = vpop.xlane.xlu0 %1705
        %1707 = vadd.xlane.f32.xlu0 %v1704
        %v1708 = vpop.xlane.xlu0 %1707
        %v1709 = vrcp.pop %v1706
        %v1710 = vrcp.pop %v1708
        %v1711 = vmul.f32 %v1702, %v1709
        %v1712 = vmul.f32 %v1704, %v1710
        %v1713 = vpack.c.bf16 %v1712, %v1711
        %v1715 = vunpack.c.l.b16 %v1713
        %v1716 = vunpack.c.h.b16 %v1713
        %v1717 = vpack.c.b16 %v1715, %v1715
        %v1718 = vpack.c.b16 %v1716, %v1716
        %1721 = vst [vmem:[%s477] sm:$0xf] %v1717
        %1722 = vst [vmem:[%s477 + $0x4] sm:$0xf] %v1718
        %s1723 = sand.u32 %s275, 1
        %s1724 = scalar_lea.sflag [#allocation4], %s1723
        %s1725 = sand.u32 %s275, 1
        %s1726 = smul.addr %s1725, 8
        %s1727 = scalar_lea.vmem [#allocation13], %s1726
        // Predicated region
        $region89: #{tpu_custom_call.1} parent=63 // pred_check
          %p1728 = pneg %p285
        $region90: #{tpu_custom_call.1} parent=63 // pred_check_branch
          %1730 = sbr.rel (%p1728) target = $region92
        $region91: #{tpu_custom_call.1} parent=63 // pred_region
          %s1731 = smul.u32 2, %s31
          %s1733 = ssub.s32 128, 128
          %1734 = vsyncadd %s1724, %s1733
          %s1735 = smul.addr %s1731, 64
          %s1736 = scalar_lea.hbm %s11, %s1735
          %s1737 = sshll.u32 %s1727, 4
          %s1738 = int_to_ptr.vmem [resolvable:$true] %s1737
          %1743 = dma.vmem_to_hbm [thread:$0]  %s1738, 128, %s1736, %s1724, 64, 64, 4
        $region92: #{tpu_custom_call.1} parent=63 // pred_fallthru
          _
      $region64: #{tpu_custom_call.1} parent=5 // pred_fallthru
        _
      %p1744 = scmp.le.s32.totalorder 2, %s26
      // Predicated region
      $region93: #{tpu_custom_call.1} parent=5 // pred_check
        %p1745 = pneg %p1744
      $region94: #{tpu_custom_call.1} parent=5 // pred_check_branch
        %1747 = sbr.rel (%p1745) target = $region96
      $region95: #{tpu_custom_call.1} parent=5 // pred_region
        %s1748 = ssub.s32 %s26, 2
        // Predicated region
        $region97: #{tpu_custom_call.1} parent=95 // pred_check
          %p1749 = pneg %p291
        $region98: #{tpu_custom_call.1} parent=95 // pred_check_branch
          %1751 = sbr.rel (%p1749) target = $region100
        $region99: #{tpu_custom_call.1} parent=95 // pred_region
          %s1752 = sand.u32 %s276, 1
          %s1753 = scalar_lea.sflag [#allocation4], %s1752
          %s1754 = sand.u32 %s276, 1
          %s1755 = smul.addr %s1754, 8
          %s1756 = scalar_lea.vmem [#allocation13], %s1755
          %1757 = dma.done %s1753, 128
        $region100: #{tpu_custom_call.1} parent=95 // pred_fallthru
          _
      $region96: #{tpu_custom_call.1} parent=5 // pred_fallthru
        _
    $region6: #{tpu_custom_call.1} parent=1 // loop_footer
      %s30 = sadd.s32 1, %s26
    $region7: #{tpu_custom_call.1} parent=1 // loop_footer_branch
      %25 = sbr.rel target = $region3
    $region8: #{tpu_custom_call.1} parent=1 // loop_exit
      _
    %1758 = vsyncpa [#allocation3], 1
    %s1759 = scalar_lea.sflag [#allocation3], 1
    %1760 = vsyncpa %s1759, 1
    %1761 = vsyncpa [#allocation6], 1
    %1762 = vsyncpa [#allocation9], 1
    %1763 = vsyncpa [#allocation12], 1
    %1764 = vsyncpa [#allocation4], 1
    %s1765 = scalar_lea.sflag [#allocation4], 1
    %1766 = vsyncpa %s1765, 1

</llo_original>
